<compile_context>
chip_gen: v7x
topology: tpu7x:2x2x1
jax: 0.10.0
libtpu: 0.0.40
codegen_flags: <defaults>
</compile_context>

<pallas_src>
import functools

import jax
import jax.numpy as jnp
import numpy as np
from jax.experimental import pallas as pl
from jax.experimental.pallas import tpu as pltpu

BN_EPS = 1e-5
# bf16 operands: native MXU rate on v6e/v7x and half the HBM/VMEM traffic.
# Accumulation (preferred_element_type) and the bias+ReLU epilogue stay f32.
MATMUL_DTYPE = jnp.bfloat16


def _row_align():
    # Sublane packing: 8 rows per 32-bit tile, 16 rows for 16-bit dtypes.
    return 16 if jnp.dtype(MATMUL_DTYPE).itemsize == 2 else 8


# --------------------------------------------------------------------------- #
# Kernel: one row-tile of  conv1+BN+ReLU -> conv2+BN+ReLU  (batch-folded slab)  #
# --------------------------------------------------------------------------- #
def _fused_conv_block_kernel(xa_ref, xb_ref, b1m_ref, b1v_ref, b2m_ref, b2v_ref,
                             o_ref, xwin_ref, act_ref, *, slab_h, true_h):
    # xa_ref  : (TH, W*Cin)         aligned padded-slab rows [t*TH, t*TH+TH)
    # xb_ref  : (RA, W*Cin)         next RA rows (only the first 4 = bottom halo)
    # b1m_ref : (3, W*Cin, W*Cout)  stage-1 banded Toeplitz weights (BN scale folded)
    # b1v_ref : (1, W*Cout)         stage-1 folded bias (f32)
    # b2m_ref : (3, W*Cout, W*Cout) stage-2 banded Toeplitz weights
    # b2v_ref : (1, W*Cout)         stage-2 folded bias (f32)
    # o_ref   : (TH, W*Cout)        output tile (lane-dense)
    # xwin_ref: VMEM (TH+4, W*Cin)  halo'd input window scratch (MATMUL_DTYPE)
    # act_ref : VMEM (TH+2, W*Cout) stage-1 activation scratch (never hits HBM)
    th = o_ref.shape[0]
    t = pl.program_id(0)

    # Halo'd window = padded-slab rows [t*TH, t*TH + TH + 4).
    xwin_ref[0:th, :] = xa_ref[...]
    xwin_ref[th:th + 4, :] = xb_ref[0:4, :]

    # ---- stage 1: conv1 (scale folded) + bias + ReLU, act rows [t*TH-1, t*TH+TH+1) ----
    # NOTE: ky stays as 3 separate K=W*Cin dots; folding ky into one K=3*W*Cin
    # matmul would need an in-kernel im2col copy with 64-lane-offset stores at
    # these shapes.  Revisit if W*Cin grows.
    a = jnp.dot(xwin_ref[0:th + 2, :], b1m_ref[0], preferred_element_type=jnp.float32)
    a = a + jnp.dot(xwin_ref[1:th + 3, :], b1m_ref[1], preferred_element_type=jnp.float32)
    a = a + jnp.dot(xwin_ref[2:th + 4, :], b1m_ref[2], preferred_element_type=jnp.float32)
    a = jnp.maximum(a + b1v_ref[...], 0.0)
    # Rows outside a real image (slab separators / halo rows) must be exactly zero
    # for stage-2 'SAME' padding, not relu(bias): mask with the per-image row index.
    g = t * th - 1 + jax.lax.broadcasted_iota(jnp.int32, (th + 2, 1), 0)
    row_in_slab = (g + slab_h) % slab_h
    act_ref[...] = jnp.where(row_in_slab < true_h, a, 0.0).astype(act_ref.dtype)

    # ---- stage 2: conv2 (scale folded) + bias + ReLU -> output tile ----
    y = jnp.dot(act_ref[0:th, :], b2m_ref[0], preferred_element_type=jnp.float32)
    y = y + jnp.dot(act_ref[1:th + 1, :], b2m_ref[1], preferred_element_type=jnp.float32)
    y = y + jnp.dot(act_ref[2:th + 2, :], b2m_ref[2], preferred_element_type=jnp.float32)
    o_ref[...] = jnp.maximum(y + b2v_ref[...], 0.0).astype(o_ref.dtype)


# --------------------------------------------------------------------------- #
# Wrapper helpers                                                              #
# --------------------------------------------------------------------------- #
def fold_bn(conv_bias, gamma, beta, running_mean=0.0, running_var=1.0):
    scale = gamma / jnp.sqrt(running_var + BN_EPS)
    bias = (conv_bias - running_mean) * scale + beta
    return scale, bias


def _toeplitz_weights(w_hwio, width):
    """HWIO (3,3,Cin,Cout) conv weights -> (3, W*Cin, W*Cout) banded matrices.

    B[ky, wi*Cin+ci, wo*Cout+co] = w[ky, wi-wo+1, ci, co] when |wi-wo| <= 1, else 0,
    i.e. the kx taps and the horizontal 'SAME' zero padding are baked in.
    """
    _, _, cin, cout = w_hwio.shape
    wi = jnp.arange(width)[None, :, None]
    wo = jnp.arange(width)[None, None, :]
    kx = jnp.arange(3)[:, None, None]
    ind = (wi == wo + kx - 1).astype(w_hwio.dtype)              # (3, W, W)
    b = jnp.einsum("xab,yxio->yaibo", ind, w_hwio)              # (3, W, Cin, W, Cout)
    return b.reshape(3, width * cin, width * cout)


def _tile_vmem_bytes(th, k1, k2, dsize, ra):
    """Per-step VMEM footprint: double-buffered pipeline blocks + scratch."""
    io = 2 * (th * k1 + ra * k1) * dsize + 2 * th * k2 * 4       # xa/xb in, f32 out
    wgt = 2 * (3 * (k1 * k2 + k2 * k2) * dsize + 2 * k2 * 4)     # Toeplitz weights + biases
    scr = (th + 4) * k1 * dsize + (th + 2) * k2 * dsize          # xwin + act scratch
    return io + wgt + scr


def _min_parallel_tiles():
    """>=2 'parallel' grid steps on 2-TensorCore parts (v7x / v4 megacore) so both
    cores get work; 1 on single-TC parts (v5e/v6e) to avoid per-step overhead and
    duplicated halo DMA."""
    try:
        kind = jax.devices()[0].device_kind.lower()
    except Exception:
        return 1
    return 2 if ("v7" in kind or "v4" in kind) else 1


def _pick_row_tile(total_rows, k1, k2, dsize, ra, min_tiles,
                   vmem_budget=8 << 20, cap=1024):
    """Largest row tile (multiple of the sublane alignment) that divides
    total_rows, fits the VMEM budget and leaves at least `min_tiles` grid steps."""
    def best(min_t):
        got, th = None, ra
        while th <= min(total_rows, cap):
            if (total_rows % th == 0 and total_rows // th >= min_t
                    and _tile_vmem_bytes(th, k1, k2, dsize, ra) <= vmem_budget):
                got = th
            th += ra
        return got
    return best(min_tiles) or best(1) or ra


def conv_block_forward(x_nchw, params):
    """Equivalent of conv_block.forward (eval-mode BatchNorm). NCHW in, NCHW out."""
    n, cin, h, w = x_nchw.shape
    cout = params["w1"].shape[-1]
    k1, k2 = w * cin, w * cout
    dsize = jnp.dtype(MATMUL_DTYPE).itemsize
    ra = _row_align()

    # Fold BN into per-channel scale (into the conv weights) and bias.
    s1, bias1 = fold_bn(params["b1"], params["g1"], params["beta1"])
    s2, bias2 = fold_bn(params["b2"], params["g2"], params["beta2"])
    b1m = _toeplitz_weights(params["w1"] * s1, w).astype(MATMUL_DTYPE)
    b2m = _toeplitz_weights(params["w2"] * s2, w).astype(MATMUL_DTYPE)
    b1v = jnp.tile(bias1, w)[None, :].astype(jnp.float32)        # (1, W*Cout)
    b2v = jnp.tile(bias2, w)[None, :].astype(jnp.float32)

    # Batch folded into the row axis: image i occupies rows [i*HS, i*HS+h) of a
    # (N*HS, W*Cin) slab; the remaining HS-h >= 2 zero rows per slab double as the
    # vertical 'SAME' halo between neighbouring images.
    hs = ((h + 2 + ra - 1) // ra) * ra
    r_total = n * hs
    th = _pick_row_tile(r_total, k1, k2, dsize, ra, _min_parallel_tiles())
    nt = r_total // th

    # NCHW -> packed rows (lane index = w_idx*Cin + c).  2 zero rows on top and
    # RA-2 below give every tile its aligned window plus the trailing halo block.
    xp = jnp.transpose(x_nchw, (0, 2, 3, 1)).reshape(n, h, k1).astype(MATMUL_DTYPE)
    xp = jnp.pad(xp, ((0, 0), (0, hs - h), (0, 0))).reshape(r_total, k1)
    xp = jnp.pad(xp, ((2, ra - 2), (0, 0)))                      # (r_total + ra, k1)

    kernel = functools.partial(_fused_conv_block_kernel, slab_h=hs, true_h=h)

    # Advisory cost: true conv FLOPs (not Toeplitz-inflated), dtype-aware bytes,
    # halo block charged once per tile (not a full re-read of the input).
    flops = 2 * 9 * n * h * w * cout * (cin + cout)
    bytes_accessed = int((r_total + ra + nt * ra) * k1 * dsize
                         + 3 * (k1 * k2 + k2 * k2) * dsize
                         + 2 * k2 * 4 + r_total * k2 * 4)
    vmem_limit = int(min(64 << 20,
                         max(8 << 20, 2 * _tile_vmem_bytes(th, k1, k2, dsize, ra))))

    out = pl.pallas_call(
        kernel,
        out_shape=jax.ShapeDtypeStruct((r_total, k2), jnp.float32),
        grid_spec=pltpu.PrefetchScalarGridSpec(
            num_scalar_prefetch=0,
            grid=(nt,),
            in_specs=[
                pl.BlockSpec((th, k1), lambda t: (t, 0)),                     # aligned rows
                pl.BlockSpec((ra, k1), lambda t: ((t + 1) * (th // ra), 0)),  # bottom halo
                # Constant index maps -> fetched once by the pipeline.
                # TODO(synk): single-buffer these (pipeline_mode=pl.Buffered(1)) if W*C grows.
                pl.BlockSpec((3, k1, k2), lambda t: (0, 0, 0)),               # stage-1 W
                pl.BlockSpec((1, k2), lambda t: (0, 0)),                      # stage-1 bias
                pl.BlockSpec((3, k2, k2), lambda t: (0, 0, 0)),               # stage-2 W
                pl.BlockSpec((1, k2), lambda t: (0, 0)),                      # stage-2 bias
            ],
            out_specs=pl.BlockSpec((th, k2), lambda t: (t, 0)),               # lane-dense
            scratch_shapes=[
                pltpu.VMEM((th + 4, k1), MATMUL_DTYPE),   # halo'd input window
                pltpu.VMEM((th + 2, k2), MATMUL_DTYPE),   # stage-1 activation (on-chip only)
            ],
        ),
        compiler_params=pltpu.CompilerParams(
            dimension_semantics=("parallel",),
            vmem_limit_bytes=vmem_limit,
        ),
        cost_estimate=pl.CostEstimate(
            flops=flops, transcendentals=0, bytes_accessed=bytes_accessed),
    )(xp, xp, b1m, b1v, b2m, b2v)

    out = out.reshape(n, hs, w, cout)[:, :h]
    return jnp.transpose(out, (0, 3, 1, 2))                      # NHWC -> NCHW


# --------------------------------------------------------------------------- #
# Synthetic parameters + pure-JAX references                                   #
# --------------------------------------------------------------------------- #
def make_params(key, ch_in, ch_out):
    """Deterministic synthetic parameters matching nn.Conv2d/BatchNorm2d shapes."""
    ks = jax.random.split(key, 8)
    p = {}
    p["w1"] = jax.random.normal(ks[0], (3, 3, ch_in, ch_out), jnp.float32) * 0.1
    p["b1"] = jax.random.normal(ks[1], (ch_out,), jnp.float32) * 0.1
    p["g1"] = 1.0 + 0.1 * jax.random.normal(ks[2], (ch_out,), jnp.float32)
    p["beta1"] = 0.1 * jax.random.normal(ks[3], (ch_out,), jnp.float32)
    p["w2"] = jax.random.normal(ks[4], (3, 3, ch_out, ch_out), jnp.float32) * 0.1
    p["b2"] = jax.random.normal(ks[5], (ch_out,), jnp.float32) * 0.1
    p["g2"] = 1.0 + 0.1 * jax.random.normal(ks[6], (ch_out,), jnp.float32)
    p["beta2"] = 0.1 * jax.random.normal(ks[7], (ch_out,), jnp.float32)
    return p


def _ref_conv(x_nhwc, w_hwio):
    return jax.lax.conv_general_dilated(
        x_nhwc, w_hwio, window_strides=(1, 1), padding="SAME",
        dimension_numbers=("NHWC", "HWIO", "NHWC"),
        precision=jax.lax.Precision.HIGHEST)


def conv_block_reference(x_nchw, params, quantize=True):
    """Eval-mode reference.  With quantize=True the operands are rounded at exactly
    the points the kernel rounds (bf16 inputs/weights/stage-1 act, f32 accumulation
    and bias), so the comparison isolates kernel bugs from expected bf16 rounding."""
    if quantize:
        q = lambda a: a.astype(MATMUL_DTYPE).astype(jnp.float32)
    else:
        q = lambda a: a
    x = jnp.transpose(x_nchw, (0, 2, 3, 1))
    s1, b1 = fold_bn(params["b1"], params["g1"], params["beta1"])
    s2, b2 = fold_bn(params["b2"], params["g2"], params["beta2"])
    y = jnp.maximum(_ref_conv(q(x), q(params["w1"] * s1)) + b1, 0.0)
    y = jnp.maximum(_ref_conv(q(y), q(params["w2"] * s2)) + b2, 0.0)
    return jnp.transpose(y, (0, 3, 1, 2))


if __name__ == "__main__":
    key = jax.random.PRNGKey(0)
    k_x, k_p = jax.random.split(key)

    N, CH_IN, CH_OUT, H, W = 2, 4, 8, 16, 16
    x = jax.random.normal(k_x, (N, CH_IN, H, W), jnp.float32)   # NCHW, like PyTorch
    params = make_params(k_p, CH_IN, CH_OUT)

    out = jax.jit(conv_block_forward)(x, params)
    out = jax.block_until_ready(out)
    assert out.shape == (N, CH_OUT, H, W), out.shape

    # Tight check vs. a matched-precision reference, loose check vs. the full-f32
    # module semantics (the difference is only the intentional bf16 rounding).
    ref_q = jax.block_until_ready(conv_block_reference(x, params, quantize=True))
    ref_f = jax.block_until_ready(conv_block_reference(x, params, quantize=False))
    np.testing.assert_allclose(np.asarray(out), np.asarray(ref_q), rtol=5e-3, atol=5e-3)
    np.testing.assert_allclose(np.asarray(out), np.asarray(ref_f), rtol=1e-1, atol=1e-1)

    print("KERNEL_OK")
</pallas_src>

<mosaic_0001>
module attributes {stable_mosaic.version = 11 : i64} {
  func.func @_fused_conv_block_kernel(%arg0: i32, %arg1: memref<64x64xbf16, #tpu.memory_space<vmem>>, %arg2: memref<16x64xbf16, #tpu.memory_space<vmem>>, %arg3: memref<3x64x128xbf16, #tpu.memory_space<vmem>>, %arg4: memref<1x128xf32, #tpu.memory_space<vmem>>, %arg5: memref<3x128x128xbf16, #tpu.memory_space<vmem>>, %arg6: memref<1x128xf32, #tpu.memory_space<vmem>>, %arg7: memref<64x128xf32, #tpu.memory_space<vmem>>, %arg8: memref<68x64xbf16, #tpu.memory_space<vmem>>, %arg9: memref<66x128xbf16, #tpu.memory_space<vmem>>) attributes {dimension_semantics = [#tpu.dimension_semantics<parallel>], iteration_bounds = array<i64: 1>, scalar_prefetch = 0 : i64, scratch_operands = 2 : i64, tpu.core_type = #tpu.core_type<tc>, window_params = [{transform_indices = @transform_0, window_bounds = array<i64: 64, 64>}, {transform_indices = @transform_1, window_bounds = array<i64: 16, 64>}, {pipeline_mode = #tpu.pipeline_mode<synchronous>, transform_indices = @transform_2, window_bounds = array<i64: 3, 64, 128>}, {pipeline_mode = #tpu.pipeline_mode<synchronous>, transform_indices = @transform_3, window_bounds = array<i64: 1, 128>}, {pipeline_mode = #tpu.pipeline_mode<synchronous>, transform_indices = @transform_4, window_bounds = array<i64: 3, 128, 128>}, {pipeline_mode = #tpu.pipeline_mode<synchronous>, transform_indices = @transform_5, window_bounds = array<i64: 1, 128>}, {transform_indices = @transform_6, window_bounds = array<i64: 64, 128>}]} {
    %c0 = arith.constant 0 : index
    %c0_0 = arith.constant 0 : index
    %0 = vector.load %arg1[%c0, %c0_0] : memref<64x64xbf16, #tpu.memory_space<vmem>>, vector<64x64xbf16>
    %c0_1 = arith.constant 0 : index
    %c0_2 = arith.constant 0 : index
    %1 = vector.load %arg8[%c0_1, %c0_2] : memref<68x64xbf16, #tpu.memory_space<vmem>>, vector<64x64xbf16>
    tpu.vector_store %arg8[%c0_1, %c0_2], %0 {strides = array<i32>} : memref<68x64xbf16, #tpu.memory_space<vmem>>, vector<64x64xbf16>,
    %c0_3 = arith.constant 0 : index
    %c0_4 = arith.constant 0 : index
    %2 = vector.load %arg2[%c0_3, %c0_4] : memref<16x64xbf16, #tpu.memory_space<vmem>>, vector<4x64xbf16>
    %c64 = arith.constant 64 : index
    %c0_5 = arith.constant 0 : index
    %3 = vector.load %arg8[%c64, %c0_5] : memref<68x64xbf16, #tpu.memory_space<vmem>>, vector<4x64xbf16>
    tpu.vector_store %arg8[%c64, %c0_5], %2 {strides = array<i32>} : memref<68x64xbf16, #tpu.memory_space<vmem>>, vector<4x64xbf16>,
    %c0_6 = arith.constant 0 : index
    %c0_7 = arith.constant 0 : index
    %4 = vector.load %arg8[%c0_6, %c0_7] : memref<68x64xbf16, #tpu.memory_space<vmem>>, vector<66x64xbf16>
    %c0_8 = arith.constant 0 : index
    %c0_9 = arith.constant 0 : index
    %c0_10 = arith.constant 0 : index
    %5 = vector.load %arg3[%c0_8, %c0_9, %c0_10] : memref<3x64x128xbf16, #tpu.memory_space<vmem>>, vector<1x64x128xbf16>
    %6 = vector.shape_cast %5 : vector<1x64x128xbf16> to vector<64x128xbf16>
    %cst = arith.constant dense<0.000000e+00> : vector<66x128xf32>
    %7 = tpu.matmul %4, %6, %cst {dimension_numbers = #tpu.dot_dimension_numbers<[1], [0], [0], [1], [0, 0, 1, 1], [], []>} : vector<66x64xbf16>, vector<64x128xbf16>, vector<66x128xf32> -> vector<66x128xf32>
    %c1 = arith.constant 1 : index
    %c0_11 = arith.constant 0 : index
    %8 = vector.load %arg8[%c1, %c0_11] : memref<68x64xbf16, #tpu.memory_space<vmem>>, vector<66x64xbf16>
    %c1_12 = arith.constant 1 : index
    %c0_13 = arith.constant 0 : index
    %c0_14 = arith.constant 0 : index
    %9 = vector.load %arg3[%c1_12, %c0_13, %c0_14] : memref<3x64x128xbf16, #tpu.memory_space<vmem>>, vector<1x64x128xbf16>
    %10 = vector.shape_cast %9 : vector<1x64x128xbf16> to vector<64x128xbf16>
    %cst_15 = arith.constant dense<0.000000e+00> : vector<66x128xf32>
    %11 = tpu.matmul %8, %10, %cst_15 {dimension_numbers = #tpu.dot_dimension_numbers<[1], [0], [0], [1], [0, 0, 1, 1], [], []>} : vector<66x64xbf16>, vector<64x128xbf16>, vector<66x128xf32> -> vector<66x128xf32>
    %12 = arith.addf %7, %11 : vector<66x128xf32>
    %c2 = arith.constant 2 : index
    %c0_16 = arith.constant 0 : index
    %13 = vector.load %arg8[%c2, %c0_16] : memref<68x64xbf16, #tpu.memory_space<vmem>>, vector<66x64xbf16>
    %c2_17 = arith.constant 2 : index
    %c0_18 = arith.constant 0 : index
    %c0_19 = arith.constant 0 : index
    %14 = vector.load %arg3[%c2_17, %c0_18, %c0_19] : memref<3x64x128xbf16, #tpu.memory_space<vmem>>, vector<1x64x128xbf16>
    %15 = vector.shape_cast %14 : vector<1x64x128xbf16> to vector<64x128xbf16>
    %cst_20 = arith.constant dense<0.000000e+00> : vector<66x128xf32>
    %16 = tpu.matmul %13, %15, %cst_20 {dimension_numbers = #tpu.dot_dimension_numbers<[1], [0], [0], [1], [0, 0, 1, 1], [], []>} : vector<66x64xbf16>, vector<64x128xbf16>, vector<66x128xf32> -> vector<66x128xf32>
    %17 = arith.addf %12, %16 : vector<66x128xf32>
    %c0_21 = arith.constant 0 : index
    %c0_22 = arith.constant 0 : index
    %18 = vector.load %arg4[%c0_21, %c0_22] : memref<1x128xf32, #tpu.memory_space<vmem>>, vector<1x128xf32>
    %19 = vector.broadcast %18 : vector<1x128xf32> to vector<66x128xf32>
    %20 = arith.addf %17, %19 : vector<66x128xf32>
    %cst_23 = arith.constant 0.000000e+00 : f32
    %21 = vector.broadcast %cst_23 : f32 to vector<66x128xf32>
    %22 = arith.maximumf %20, %21 : vector<66x128xf32>
    %c64_i32 = arith.constant 64 : i32
    %23 = arith.muli %arg0, %c64_i32 : i32
    %c1_i32 = arith.constant 1 : i32
    %24 = arith.subi %23, %c1_i32 : i32
    %25 = tpu.iota {dimensions = array<i32: 0>} : vector<66x1xi32>
    %26 = vector.broadcast %24 : i32 to vector<66x1xi32>
    %27 = arith.addi %26, %25 : vector<66x1xi32>
    %c32_i32 = arith.constant 32 : i32
    %28 = vector.broadcast %c32_i32 : i32 to vector<66x1xi32>
    %29 = arith.addi %27, %28 : vector<66x1xi32>
    %c32_i32_24 = arith.constant 32 : i32
    %c0_i32 = arith.constant 0 : i32
    %30 = arith.cmpi eq, %c32_i32_24, %c0_i32 : i32
    %c1_i32_25 = arith.constant 1 : i32
    %31 = arith.select %30, %c1_i32_25, %c32_i32_24 : i32
    %32 = vector.broadcast %31 : i32 to vector<66x1xi32>
    %33 = arith.remsi %29, %32 : vector<66x1xi32>
    %c0_i32_26 = arith.constant 0 : i32
    %34 = vector.broadcast %c0_i32_26 : i32 to vector<66x1xi32>
    %35 = arith.cmpi ne, %33, %34 : vector<66x1xi32>
    %c0_i32_27 = arith.constant 0 : i32
    %36 = vector.broadcast %c0_i32_27 : i32 to vector<66x1xi32>
    %37 = arith.cmpi slt, %33, %36 : vector<66x1xi32>
    %c0_i32_28 = arith.constant 0 : i32
    %38 = arith.cmpi slt, %31, %c0_i32_28 : i32
    %39 = vector.broadcast %38 : i1 to vector<66x1xi1>
    %40 = vector.broadcast %39 : vector<66x1xi1> to vector<66x1xi1>
    %41 = arith.xori %37, %40 : vector<66x1xi1>
    %42 = arith.andi %41, %35 : vector<66x1xi1>
    %43 = vector.broadcast %31 : i32 to vector<66x1xi32>
    %44 = arith.addi %33, %43 : vector<66x1xi32>
    %45 = arith.select %42, %44, %33 : vector<66x1xi1>, vector<66x1xi32>
    %c16_i32 = arith.constant 16 : i32
    %46 = vector.broadcast %c16_i32 : i32 to vector<66x1xi32>
    %47 = arith.cmpi slt, %45, %46 : vector<66x1xi32>
    %cst_29 = arith.constant 0.000000e+00 : f32
    %48 = vector.shape_cast %47 : vector<66x1xi1> to vector<66x1xi1>
    %49 = vector.broadcast %48 : vector<66x1xi1> to vector<66x128xi1>
    %50 = vector.broadcast %cst_29 : f32 to vector<66x128xf32>
    %51 = arith.select %49, %22, %50 : vector<66x128xi1>, vector<66x128xf32>
    %52 = arith.truncf %51 : vector<66x128xf32> to vector<66x128xbf16>
    %c0_30 = arith.constant 0 : index
    %c0_31 = arith.constant 0 : index
    %53 = vector.load %arg9[%c0_30, %c0_31] : memref<66x128xbf16, #tpu.memory_space<vmem>>, vector<66x128xbf16>
    tpu.vector_store %arg9[%c0_30, %c0_31], %52 {strides = array<i32>} : memref<66x128xbf16, #tpu.memory_space<vmem>>, vector<66x128xbf16>,
    %c0_32 = arith.constant 0 : index
    %c0_33 = arith.constant 0 : index
    %54 = vector.load %arg9[%c0_32, %c0_33] : memref<66x128xbf16, #tpu.memory_space<vmem>>, vector<64x128xbf16>
    %c0_34 = arith.constant 0 : index
    %c0_35 = arith.constant 0 : index
    %c0_36 = arith.constant 0 : index
    %55 = vector.load %arg5[%c0_34, %c0_35, %c0_36] : memref<3x128x128xbf16, #tpu.memory_space<vmem>>, vector<1x128x128xbf16>
    %56 = vector.shape_cast %55 : vector<1x128x128xbf16> to vector<128x128xbf16>
    %cst_37 = arith.constant dense<0.000000e+00> : vector<64x128xf32>
    %57 = tpu.matmul %54, %56, %cst_37 {dimension_numbers = #tpu.dot_dimension_numbers<[1], [0], [0], [1], [0, 0, 1, 1], [], []>} : vector<64x128xbf16>, vector<128x128xbf16>, vector<64x128xf32> -> vector<64x128xf32>
    %c1_38 = arith.constant 1 : index
    %c0_39 = arith.constant 0 : index
    %58 = vector.load %arg9[%c1_38, %c0_39] : memref<66x128xbf16, #tpu.memory_space<vmem>>, vector<64x128xbf16>
    %c1_40 = arith.constant 1 : index
    %c0_41 = arith.constant 0 : index
    %c0_42 = arith.constant 0 : index
    %59 = vector.load %arg5[%c1_40, %c0_41, %c0_42] : memref<3x128x128xbf16, #tpu.memory_space<vmem>>, vector<1x128x128xbf16>
    %60 = vector.shape_cast %59 : vector<1x128x128xbf16> to vector<128x128xbf16>
    %cst_43 = arith.constant dense<0.000000e+00> : vector<64x128xf32>
    %61 = tpu.matmul %58, %60, %cst_43 {dimension_numbers = #tpu.dot_dimension_numbers<[1], [0], [0], [1], [0, 0, 1, 1], [], []>} : vector<64x128xbf16>, vector<128x128xbf16>, vector<64x128xf32> -> vector<64x128xf32>
    %62 = arith.addf %57, %61 : vector<64x128xf32>
    %c2_44 = arith.constant 2 : index
    %c0_45 = arith.constant 0 : index
    %63 = vector.load %arg9[%c2_44, %c0_45] : memref<66x128xbf16, #tpu.memory_space<vmem>>, vector<64x128xbf16>
    %c2_46 = arith.constant 2 : index
    %c0_47 = arith.constant 0 : index
    %c0_48 = arith.constant 0 : index
    %64 = vector.load %arg5[%c2_46, %c0_47, %c0_48] : memref<3x128x128xbf16, #tpu.memory_space<vmem>>, vector<1x128x128xbf16>
    %65 = vector.shape_cast %64 : vector<1x128x128xbf16> to vector<128x128xbf16>
    %cst_49 = arith.constant dense<0.000000e+00> : vector<64x128xf32>
    %66 = tpu.matmul %63, %65, %cst_49 {dimension_numbers = #tpu.dot_dimension_numbers<[1], [0], [0], [1], [0, 0, 1, 1], [], []>} : vector<64x128xbf16>, vector<128x128xbf16>, vector<64x128xf32> -> vector<64x128xf32>
    %67 = arith.addf %62, %66 : vector<64x128xf32>
    %c0_50 = arith.constant 0 : index
    %c0_51 = arith.constant 0 : index
    %68 = vector.load %arg6[%c0_50, %c0_51] : memref<1x128xf32, #tpu.memory_space<vmem>>, vector<1x128xf32>
    %69 = vector.broadcast %68 : vector<1x128xf32> to vector<64x128xf32>
    %70 = arith.addf %67, %69 : vector<64x128xf32>
    %cst_52 = arith.constant 0.000000e+00 : f32
    %71 = vector.broadcast %cst_52 : f32 to vector<64x128xf32>
    %72 = arith.maximumf %70, %71 : vector<64x128xf32>
    %c0_53 = arith.constant 0 : index
    %c0_54 = arith.constant 0 : index
    %73 = vector.load %arg7[%c0_53, %c0_54] : memref<64x128xf32, #tpu.memory_space<vmem>>, vector<64x128xf32>
    tpu.vector_store %arg7[%c0_53, %c0_54], %72 {strides = array<i32>} : memref<64x128xf32, #tpu.memory_space<vmem>>, vector<64x128xf32>,
    return
  }
  func.func @transform_0(%arg0: i32) -> (i32, i32) {
    %c0_i32 = arith.constant 0 : i32
    %c0_i32_0 = arith.constant 0 : i32
    return %arg0, %c0_i32 : i32, i32
  }
  func.func @transform_1(%arg0: i32) -> (i32, i32) {
    %c1_i32 = arith.constant 1 : i32
    %0 = arith.addi %arg0, %c1_i32 : i32
    %c4_i32 = arith.constant 4 : i32
    %1 = arith.muli %0, %c4_i32 : i32
    %c0_i32 = arith.constant 0 : i32
    %c0_i32_0 = arith.constant 0 : i32
    return %1, %c0_i32 : i32, i32
  }
  func.func @transform_2(%arg0: i32) -> (i32, i32, i32) {
    %c0_i32 = arith.constant 0 : i32
    %c0_i32_0 = arith.constant 0 : i32
    %c0_i32_1 = arith.constant 0 : i32
    %c0_i32_2 = arith.constant 0 : i32
    return %c0_i32, %c0_i32_0, %c0_i32_1 : i32, i32, i32
  }
  func.func @transform_3(%arg0: i32) -> (i32, i32) {
    %c0_i32 = arith.constant 0 : i32
    %c0_i32_0 = arith.constant 0 : i32
    %c0_i32_1 = arith.constant 0 : i32
    return %c0_i32, %c0_i32_0 : i32, i32
  }
  func.func @transform_4(%arg0: i32) -> (i32, i32, i32) {
    %c0_i32 = arith.constant 0 : i32
    %c0_i32_0 = arith.constant 0 : i32
    %c0_i32_1 = arith.constant 0 : i32
    %c0_i32_2 = arith.constant 0 : i32
    return %c0_i32, %c0_i32_0, %c0_i32_1 : i32, i32, i32
  }
  func.func @transform_5(%arg0: i32) -> (i32, i32) {
    %c0_i32 = arith.constant 0 : i32
    %c0_i32_0 = arith.constant 0 : i32
    %c0_i32_1 = arith.constant 0 : i32
    return %c0_i32, %c0_i32_0 : i32, i32
  }
  func.func @transform_6(%arg0: i32) -> (i32, i32) {
    %c0_i32 = arith.constant 0 : i32
    %c0_i32_0 = arith.constant 0 : i32
    return %arg0, %c0_i32 : i32, i32
  }
}

</mosaic_0001>

<llo_original>
// kernel: tile.13
$region0: #{tile.13}
  #allocation0 [shape = 's32[1]{0}', space=sflag, size = 0x4, scoped, tag = 'scoped memory for tile.13']
  %s0 = inlined_call_operand.vmem [shape: f32[8], index: 0, kind: input, shape index: {}]
  %s1 = inlined_call_operand.vmem [shape: f32[16,8], index: 1, kind: output, shape index: {}]
  // Predicated region
  $region2: #{tile.13} parent=0 // pred_check
    _
  $region3: #{tile.13} parent=0 // pred_check_branch
    %3 = sbr.rel (0) target = $region5
  $region4: #{tile.13} parent=0 // pred_region
    _
  $region5: #{tile.13} parent=0 // pred_fallthru
    _
  %v4 = vld [vmem:[%s0] ss:$0 sm:$0xff]
  %5 = vst [vmem:[%s1] sm:$0xff] %v4
  %s6 = scalar_lea.vmem %s1, 8
  %7 = vst [vmem:[%s6] sm:$0xff] %v4

// kernel: tile.14
$region0: #{tile.14}
  %s0 = inlined_call_operand.vmem [shape: f32[16,8], index: 0, kind: input, shape index: {}]
  %s1 = inlined_call_operand.vmem [shape: f32[1,128], index: 1, kind: output, shape index: {}]
  $region1: #{tile.14} parent=0
    #allocation0 [shape = 'u8[4096]{0}', space=vmem, size = 0x1000, scoped, tag = 'scoped mem for output reshape']
    %v2 = vld [vmem:[%s0] sm:$0x1]
    %vm3 = vcmask 64512
    %4 = vst.msk [vmem:[#allocation0] sm:$0x1] %vm3, %v2
    %s5 = scalar_lea.vmem %s0, 15
    %v6 = vld [vmem:[%s5] sm:$0x1]
    %7 = vrot.lane.b32.xlu0 %v6, 120
    %v8 = vpop.permute.xlu0 %7
    %vm9 = vcmask 1048512
    %10 = vst.msk [vmem:[#allocation0] sm:$0x1] %vm9, %v8
    %s11 = scalar_lea.vmem %s0, 14
    %v12 = vld [vmem:[%s11] sm:$0x1]
    %13 = vrot.lane.b32.xlu0 %v12, 112
    %v14 = vpop.permute.xlu0 %13
    %vm15 = vcmask 982912
    %16 = vst.msk [vmem:[#allocation0] sm:$0x1] %vm15, %v14
    %s17 = scalar_lea.vmem %s0, 13
    %v18 = vld [vmem:[%s17] sm:$0x1]
    %19 = vrot.lane.b32.xlu0 %v18, 104
    %v20 = vpop.permute.xlu0 %19
    %vm21 = vcmask 917312
    %22 = vst.msk [vmem:[#allocation0] sm:$0x1] %vm21, %v20
    %s23 = scalar_lea.vmem %s0, 12
    %v24 = vld [vmem:[%s23] sm:$0x1]
    %25 = vrot.lane.b32.xlu0 %v24, 96
    %v26 = vpop.permute.xlu0 %25
    %vm27 = vcmask 851712
    %28 = vst.msk [vmem:[#allocation0] sm:$0x1] %vm27, %v26
    %s29 = scalar_lea.vmem %s0, 11
    %v30 = vld [vmem:[%s29] sm:$0x1]
    %31 = vrot.lane.b32.xlu0 %v30, 88
    %v32 = vpop.permute.xlu0 %31
    %vm33 = vcmask 786112
    %34 = vst.msk [vmem:[#allocation0] sm:$0x1] %vm33, %v32
    %s35 = scalar_lea.vmem %s0, 10
    %v36 = vld [vmem:[%s35] sm:$0x1]
    %37 = vrot.lane.b32.xlu0 %v36, 80
    %v38 = vpop.permute.xlu0 %37
    %vm39 = vcmask 720512
    %40 = vst.msk [vmem:[#allocation0] sm:$0x1] %vm39, %v38
    %s41 = scalar_lea.vmem %s0, 9
    %v42 = vld [vmem:[%s41] sm:$0x1]
    %43 = vrot.lane.b32.xlu0 %v42, 72
    %v44 = vpop.permute.xlu0 %43
    %vm45 = vcmask 654912
    %46 = vst.msk [vmem:[#allocation0] sm:$0x1] %vm45, %v44
    %s47 = scalar_lea.vmem %s0, 8
    %v48 = vld [vmem:[%s47] sm:$0x1]
    %49 = vrot.lane.b32.xlu0 %v48, 64
    %v50 = vpop.permute.xlu0 %49
    %vm51 = vcmask 589312
    %52 = vst.msk [vmem:[#allocation0] sm:$0x1] %vm51, %v50
    %s53 = scalar_lea.vmem %s0, 7
    %v54 = vld [vmem:[%s53] sm:$0x1]
    %55 = vrot.lane.b32.xlu0 %v54, 56
    %v56 = vpop.permute.xlu0 %55
    %vm57 = vcmask 523712
    %58 = vst.msk [vmem:[#allocation0] sm:$0x1] %vm57, %v56
    %s59 = scalar_lea.vmem %s0, 6
    %v60 = vld [vmem:[%s59] sm:$0x1]
    %61 = vrot.lane.b32.xlu0 %v60, 48
    %v62 = vpop.permute.xlu0 %61
    %vm63 = vcmask 458112
    %64 = vst.msk [vmem:[#allocation0] sm:$0x1] %vm63, %v62
    %s65 = scalar_lea.vmem %s0, 5
    %v66 = vld [vmem:[%s65] sm:$0x1]
    %67 = vrot.lane.b32.xlu0 %v66, 40
    %v68 = vpop.permute.xlu0 %67
    %vm69 = vcmask 392512
    %70 = vst.msk [vmem:[#allocation0] sm:$0x1] %vm69, %v68
    %s71 = scalar_lea.vmem %s0, 4
    %v72 = vld [vmem:[%s71] sm:$0x1]
    %73 = vrot.lane.b32.xlu0 %v72, 32
    %v74 = vpop.permute.xlu0 %73
    %vm75 = vcmask 326912
    %76 = vst.msk [vmem:[#allocation0] sm:$0x1] %vm75, %v74
    %s77 = scalar_lea.vmem %s0, 3
    %v78 = vld [vmem:[%s77] sm:$0x1]
    %79 = vrot.lane.b32.xlu0 %v78, 24
    %v80 = vpop.permute.xlu0 %79
    %vm81 = vcmask 261312
    %82 = vst.msk [vmem:[#allocation0] sm:$0x1] %vm81, %v80
    %s83 = scalar_lea.vmem %s0, 2
    %v84 = vld [vmem:[%s83] sm:$0x1]
    %85 = vrot.lane.b32.xlu0 %v84, 16
    %v86 = vpop.permute.xlu0 %85
    %vm87 = vcmask 195712
    %88 = vst.msk [vmem:[#allocation0] sm:$0x1] %vm87, %v86
    %s89 = scalar_lea.vmem %s0, 1
    %v90 = vld [vmem:[%s89] sm:$0x1]
    %91 = vrot.lane.b32.xlu0 %v90, 8
    %v92 = vpop.permute.xlu0 %91
    %vm93 = vcmask 130112
    %94 = vst.msk [vmem:[#allocation0] sm:$0x1] %vm93, %v92
    %s96 = sshllo.u32 0, 1
    %v98 = vld [vmem:[#allocation0] sm:%s96]
    %s99 = sshllo.u32 0, 1
    %100 = vst [vmem:[%s1] sm:%s99] %v98

// kernel: conv_block_forward.1
$region0: #{conv_block_forward.1}
  #allocation0 [shape = 'u32[]', space=smem, size = 0x4, offset = 0x4, fixed_abs, tag = 'smem constant byte address 0x4 - core index']
  #allocation1 [shape = 'u32[144,128]{1,0:T(1,128)}', space=vmem, size = 0x12000, scoped, tag = 'internal scratch']
  #allocation2 [shape = 'bf16[68,64]{1,0:T(8,128)(2,1)}', space=vmem, size = 0x4800, scoped, tag = 'scratch operand']
  #allocation3 [shape = 'bf16[66,128]{1,0:T(8,128)(2,1)}', space=vmem, size = 0x4800, scoped, tag = 'scratch operand']
  %s0 = inlined_call_operand.vmem [shape: bf16[80,64], index: 0, kind: input, shape index: {}, may-alias: {0,1}]
  %s1 = inlined_call_operand.vmem [shape: bf16[80,64], index: 1, kind: input, shape index: {}, may-alias: {0,1}]
  %s2 = inlined_call_operand.vmem [shape: bf16[3,64,128], index: 2, kind: input, shape index: {}]
  %s3 = inlined_call_operand.vmem [shape: f32[1,128], index: 3, kind: input, shape index: {}]
  %s4 = inlined_call_operand.vmem [shape: bf16[3,128,128], index: 4, kind: input, shape index: {}]
  %s5 = inlined_call_operand.vmem [shape: f32[1,128], index: 5, kind: input, shape index: {}]
  %s6 = inlined_call_operand.vmem [shape: f32[64,128], index: 6, kind: output, shape index: {}]
  %s7 = sld [smem:[#allocation0]]
  $region34: #{conv_block_forward.1} parent=0
    _
  %s9 = ssub.s32 1, %s7
  %s10 = scalar_select 0, %s9, %s7
  // Predicated region
  $region2: #{conv_block_forward.1} parent=0 // pred_check
    _
  $region3: #{conv_block_forward.1} parent=0 // pred_check_branch
    %12 = sbr.rel (0) target = $region5
  $region4: #{conv_block_forward.1} parent=0 // pred_region
    _
  $region5: #{conv_block_forward.1} parent=0 // pred_fallthru
    _
  // Predicated region
  $region6: #{conv_block_forward.1} parent=0 // pred_check
    _
  $region7: #{conv_block_forward.1} parent=0 // pred_check_branch
    %14 = sbr.rel (0) target = $region9
  $region8: #{conv_block_forward.1} parent=0 // pred_region
    %s15 = sadd.s32 0, 1
    %s16 = smul.u32 %s15, 4
    %s17 = smul.u32 2, %s16
    %p18 = scmp.lt.s32.totalorder %s17, 9
    %s19 = scalar_select %p18, %s17, 9
    %s20 = smul.addr %s19, 4
    %s21 = scalar_lea.vmem %s1, %s20
    %s22 = sadd.s32 0, 1
    %s23 = smul.u32 %s22, 4
    %s24 = smul.u32 2, %s23
  $region9: #{conv_block_forward.1} parent=0 // pred_fallthru
    _
  // Predicated region
  $region10: #{conv_block_forward.1} parent=0 // pred_check
    _
  $region11: #{conv_block_forward.1} parent=0 // pred_check_branch
    %26 = sbr.rel (0) target = $region13
  $region12: #{conv_block_forward.1} parent=0 // pred_region
    _
  $region13: #{conv_block_forward.1} parent=0 // pred_fallthru
    _
  // Predicated region
  $region14: #{conv_block_forward.1} parent=0 // pred_check
    _
  $region15: #{conv_block_forward.1} parent=0 // pred_check_branch
    %28 = sbr.rel (0) target = $region17
  $region16: #{conv_block_forward.1} parent=0 // pred_region
    _
  $region17: #{conv_block_forward.1} parent=0 // pred_fallthru
    _
  // Predicated region
  $region18: #{conv_block_forward.1} parent=0 // pred_check
    _
  $region19: #{conv_block_forward.1} parent=0 // pred_check_branch
    %30 = sbr.rel (0) target = $region21
  $region20: #{conv_block_forward.1} parent=0 // pred_region
    _
  $region21: #{conv_block_forward.1} parent=0 // pred_fallthru
    _
  // Predicated region
  $region22: #{conv_block_forward.1} parent=0 // pred_check
    _
  $region23: #{conv_block_forward.1} parent=0 // pred_check_branch
    %32 = sbr.rel (0) target = $region25
  $region24: #{conv_block_forward.1} parent=0 // pred_region
    _
  $region25: #{conv_block_forward.1} parent=0 // pred_fallthru
    _
  %s33 = sadd.s32 0, 1
  %s34 = smul.u32 %s33, 4
  %s35 = smul.u32 2, %s34
  %p36 = scmp.lt.s32.totalorder %s35, 9
  %s37 = scalar_select %p36, %s35, 9
  %s38 = smul.addr %s37, 4
  %s39 = scalar_lea.vmem %s1, %s38
  %s40 = sadd.s32 0, 1
  %s41 = smul.u32 %s40, 4
  %s42 = smul.u32 2, %s41
  %p43 = scmp.lt.s32.totalorder %s42, 9
  %s44 = scalar_select %p43, %s42, 9
  %s45 = smul.addr %s44, 4
  %s46 = scalar_lea.vmem %s1, %s45
  %s47 = sadd.s32 0, 1
  %s48 = smul.u32 %s47, 4
  %s49 = smul.u32 2, %s48
  %v51 = vld [vmem:[%s0] sm:$0xf]
  %v52 = vld [vmem:[%s0 + $0x4] sm:$0xf]
  %v53 = vld [vmem:[%s0 + $0x8] sm:$0xf]
  %v54 = vld [vmem:[%s0 + $0xc] sm:$0xf]
  %v55 = vld [vmem:[%s0 + $0x10] sm:$0xf]
  %v56 = vld [vmem:[%s0 + $0x14] sm:$0xf]
  %v57 = vld [vmem:[%s0 + $0x18] sm:$0xf]
  %v58 = vld [vmem:[%s0 + $0x1c] sm:$0xf]
  %vm59 = vcmask 519168
  %60 = vst.msk [vmem:[#allocation2] sm:$0xf] %vm59, %v51
  %61 = vst.msk [vmem:[#allocation2 + $0x4] sm:$0xf] %vm59, %v52
  %62 = vst.msk [vmem:[#allocation2 + $0x8] sm:$0xf] %vm59, %v53
  %63 = vst.msk [vmem:[#allocation2 + $0xc] sm:$0xf] %vm59, %v54
  %64 = vst.msk [vmem:[#allocation2 + $0x10] sm:$0xf] %vm59, %v55
  %65 = vst.msk [vmem:[#allocation2 + $0x14] sm:$0xf] %vm59, %v56
  %66 = vst.msk [vmem:[#allocation2 + $0x18] sm:$0xf] %vm59, %v57
  %67 = vst.msk [vmem:[#allocation2 + $0x1c] sm:$0xf] %vm59, %v58
  %v68 = vld [vmem:[%s46] sm:$0x3]
  %vm69 = vcmask 517120
  %70 = vst.msk [vmem:[#allocation2 + $0x20] sm:$0x3] %vm69, %v68
  %v71 = vld [vmem:[#allocation2] sm:$0xf]
  %v72 = vld [vmem:[#allocation2 + $0x4] sm:$0xf]
  %v73 = vld [vmem:[#allocation2 + $0x8] sm:$0xf]
  %v74 = vld [vmem:[#allocation2 + $0xc] sm:$0xf]
  %v75 = vld [vmem:[#allocation2 + $0x10] sm:$0xf]
  %v76 = vld [vmem:[#allocation2 + $0x14] sm:$0xf]
  %v77 = vld [vmem:[#allocation2 + $0x18] sm:$0xf]
  %v78 = vld [vmem:[#allocation2 + $0x1c] sm:$0xf]
  %v79 = vld [vmem:[#allocation2 + $0x20] sm:$0x1]
  %v80 = vld [vmem:[%s2] sm:$0xf]
  %v81 = vld [vmem:[%s2 + $0x4] sm:$0xf]
  %v82 = vld [vmem:[%s2 + $0x8] sm:$0xf]
  %v83 = vld [vmem:[%s2 + $0xc] sm:$0xf]
  %v84 = vld [vmem:[%s2 + $0x10] sm:$0xf]
  %v85 = vld [vmem:[%s2 + $0x14] sm:$0xf]
  %v86 = vld [vmem:[%s2 + $0x18] sm:$0xf]
  %v87 = vld [vmem:[%s2 + $0x1c] sm:$0xf]
  %v88 = vld [vmem:[#allocation2 + $0x20] sm:$0x3]
  %s89 = scalar_lea.vmem %s2, 32
  %v90 = vld [vmem:[%s89] sm:$0xf]
  %v91 = vld [vmem:[%s89 + $0x4] sm:$0xf]
  %v92 = vld [vmem:[%s89 + $0x8] sm:$0xf]
  %v93 = vld [vmem:[%s89 + $0xc] sm:$0xf]
  %v94 = vld [vmem:[%s89 + $0x10] sm:$0xf]
  %v95 = vld [vmem:[%s89 + $0x14] sm:$0xf]
  %v96 = vld [vmem:[%s89 + $0x18] sm:$0xf]
  %v97 = vld [vmem:[%s89 + $0x1c] sm:$0xf]
  %v107 = vunpack.c.l.b16 %v71
  %v108 = vunpack.c.l.b16 %v72
  %v109 = vunpack.c.l.b16 %v73
  %v110 = vunpack.c.l.b16 %v74
  %v111 = vunpack.c.l.b16 %v75
  %v112 = vunpack.c.l.b16 %v76
  %v113 = vunpack.c.l.b16 %v77
  %v114 = vunpack.c.l.b16 %v78
  %v115 = vunpack.c.l.b16 %v88
  %v116 = vpack.c.b16 %v108, %v107
  %v117 = vpack.c.b16 %v110, %v109
  %v118 = vpack.c.b16 %v112, %v111
  %v119 = vpack.c.b16 %v114, %v113
  %v120 = vpack.c.b16 %v115, %v115
  %vm121 = vsmask.f32 7424
  %v123 = vshrl.u32 %v116, 16
  %v125 = vshll.u32 %v116, 16
  %v127 = vrot.slane %v125, 1
  %v128 = vor.u32 %v123, %v127
  %v130 = vshll.u32 %v117, 16
  %v132 = vrot.slane %v130, 1
  %v133 = vsel %vm121, %v128, %v132
  %v134 = vshrl.u32 %v117, 16
  %v136 = vor.u32 %v134, %v132
  %v138 = vshll.u32 %v118, 16
  %v140 = vrot.slane %v138, 1
  %v141 = vsel %vm121, %v136, %v140
  %v142 = vshrl.u32 %v118, 16
  %v144 = vor.u32 %v142, %v140
  %v146 = vshll.u32 %v119, 16
  %v148 = vrot.slane %v146, 1
  %v149 = vsel %vm121, %v144, %v148
  %v150 = vshrl.u32 %v119, 16
  %v152 = vor.u32 %v150, %v148
  %v154 = vshll.u32 %v120, 16
  %v156 = vrot.slane %v154, 1
  %v157 = vsel %vm121, %v152, %v156
  %v158 = vshrl.u32 %v120, 16
  %v160 = vor.u32 %v158, %v156
  %v169 = vunpack.c.l.b16 %v90
  %v170 = vunpack.c.l.b16 %v91
  %v171 = vunpack.c.l.b16 %v92
  %v172 = vunpack.c.l.b16 %v93
  %v173 = vunpack.c.l.b16 %v94
  %v174 = vunpack.c.l.b16 %v95
  %v175 = vunpack.c.l.b16 %v96
  %v176 = vunpack.c.l.b16 %v97
  %v177 = vpack.c.b16 %v170, %v169
  %v178 = vpack.c.b16 %v172, %v171
  %v179 = vpack.c.b16 %v174, %v173
  %v180 = vpack.c.b16 %v176, %v175
  %vm185 = vcmask 523264
  %v187 = vsel %vm185, %v133, 0
  %v190 = vsel %vm185, %v141, 0
  %v193 = vsel %vm185, %v149, 0
  %v196 = vsel %vm185, %v157, 0
  %v199 = vsel %vm185, %v160, 0
  %201 = vmatprep.subr.bf16.mxu0 0
  %202 = vmatpush1.bf16.msra.mxu0 %v177
  %203 = vmatprep.subr.bf16.mxu0 0
  %204 = vmatpush1.bf16.msra.mxu0 %v178
  %205 = vmatprep.subr.bf16.mxu0 0
  %206 = vmatpush1.bf16.msra.mxu0 %v179
  %207 = vmatprep.subr.bf16.mxu0 0
  %208 = vmatpush1.bf16.msra.mxu0 %v180
  %209 = vmatprep.subr.bf16.mxu0 0
  %210 = vmatpush1.bf16.msra.mxu0 0
  %211 = vmatprep.subr.bf16.mxu0 0
  %212 = vmatpush1.bf16.msra.mxu0 0
  %213 = vmatprep.subr.bf16.mxu0 0
  %214 = vmatpush1.bf16.msra.mxu0 0
  %215 = vmatprep.subr.bf16.mxu0 0
  %216 = vmatpush1.bf16.msra.mxu0 0
  %217 = vmatprep.subr.bf16.mxu0 0
  %218 = vmatpush1.bf16.msra.mxu0 0
  %219 = vmatprep.subr.bf16.mxu0 0
  %220 = vmatpush1.bf16.msra.mxu0 0
  %221 = vmatprep.subr.bf16.mxu0 0
  %222 = vmatpush1.bf16.msra.mxu0 0
  %223 = vmatprep.subr.bf16.mxu0 0
  %224 = vmatpush1.bf16.msra.mxu0 0
  %225 = vmatprep.subr.bf16.mxu0 0
  %226 = vmatpush1.bf16.msra.mxu0 0
  %227 = vmatprep.subr.bf16.mxu0 0
  %228 = vmatpush1.bf16.msra.mxu0 0
  %229 = vmatprep.subr.bf16.mxu0 0
  %230 = vmatpush1.bf16.msra.mxu0 0
  %231 = vmatprep.subr.bf16.mxu0 0
  %232 = vmatpush1.bf16.msra.mxu0 0
  %233 = vmatprep.mubr.bf16.mxu0 0
  %234 = vmatmul.mubr.bf16.gmra.mrb[0].mxu0 %v187
  %v235 = vpop.f32.mrb[0].mxu0
  %v236 = vadd.f32 0.0, %v235
  %v237 = vpop.f32.mrb[0].mxu0
  %v238 = vpop.f32.mrb[0].mxu0
  %v239 = vadd.f32 0.0, %v238
  %v240 = vpop.f32.mrb[0].mxu0
  %241 = vmatprep.mubr.bf16.mxu0 0
  %242 = vmatmul.mubr.bf16.gmra.mrb[0].mxu0 %v190
  %v243 = vpop.f32.mrb[0].mxu0
  %v244 = vadd.f32 0.0, %v243
  %v245 = vpop.f32.mrb[0].mxu0
  %v246 = vpop.f32.mrb[0].mxu0
  %v247 = vadd.f32 0.0, %v246
  %v248 = vpop.f32.mrb[0].mxu0
  %249 = vmatprep.mubr.bf16.mxu0 0
  %250 = vmatmul.mubr.bf16.gmra.mrb[0].mxu0 %v193
  %v251 = vpop.f32.mrb[0].mxu0
  %v252 = vadd.f32 0.0, %v251
  %v253 = vpop.f32.mrb[0].mxu0
  %v254 = vpop.f32.mrb[0].mxu0
  %v255 = vadd.f32 0.0, %v254
  %v256 = vpop.f32.mrb[0].mxu0
  %257 = vmatprep.mubr.bf16.mxu0 0
  %258 = vmatmul.mubr.bf16.gmra.mrb[0].mxu0 %v196
  %v259 = vpop.f32.mrb[0].mxu0
  %v260 = vadd.f32 0.0, %v259
  %v261 = vpop.f32.mrb[0].mxu0
  %v262 = vpop.f32.mrb[0].mxu0
  %v263 = vadd.f32 0.0, %v262
  %v264 = vpop.f32.mrb[0].mxu0
  %265 = vmatprep.mubr.bf16.mxu0 0
  %266 = vmatmul.mubr.bf16.gmra.mrb[0].mxu0 %v199
  %v267 = vpop.f32.mrb[0].mxu0
  %v268 = vadd.f32 0.0, %v267
  %v269 = vpop.f32.mrb[0].mxu0
  %v270 = vpop.f32.mrb[0].mxu0
  %v271 = vpop.f32.mrb[0].mxu0
  %272 = vdwg.mxu0
  %v274 = vunpack.c.l.b16 %v79
  %v275 = vpack.c.b16 %v274, %v274
  %v284 = vunpack.c.l.b16 %v80
  %v285 = vunpack.c.l.b16 %v81
  %v286 = vunpack.c.l.b16 %v82
  %v287 = vunpack.c.l.b16 %v83
  %v288 = vunpack.c.l.b16 %v84
  %v289 = vunpack.c.l.b16 %v85
  %v290 = vunpack.c.l.b16 %v86
  %v291 = vunpack.c.l.b16 %v87
  %v292 = vpack.c.b16 %v285, %v284
  %v293 = vpack.c.b16 %v287, %v286
  %v294 = vpack.c.b16 %v289, %v288
  %v295 = vpack.c.b16 %v291, %v290
  %v300 = vsel %vm185, %v116, 0
  %v302 = vsel %vm185, %v117, 0
  %v304 = vsel %vm185, %v118, 0
  %v306 = vsel %vm185, %v119, 0
  %v309 = vsel %vm185, %v275, 0
  %311 = vmatprep.subr.bf16.mxu0 0
  %312 = vmatpush1.bf16.msra.mxu0 %v292
  %313 = vmatprep.subr.bf16.mxu0 0
  %314 = vmatpush1.bf16.msra.mxu0 %v293
  %315 = vmatprep.subr.bf16.mxu0 0
  %316 = vmatpush1.bf16.msra.mxu0 %v294
  %317 = vmatprep.subr.bf16.mxu0 0
  %318 = vmatpush1.bf16.msra.mxu0 %v295
  %319 = vmatprep.subr.bf16.mxu0 0
  %320 = vmatpush1.bf16.msra.mxu0 0
  %321 = vmatprep.subr.bf16.mxu0 0
  %322 = vmatpush1.bf16.msra.mxu0 0
  %323 = vmatprep.subr.bf16.mxu0 0
  %324 = vmatpush1.bf16.msra.mxu0 0
  %325 = vmatprep.subr.bf16.mxu0 0
  %326 = vmatpush1.bf16.msra.mxu0 0
  %327 = vmatprep.subr.bf16.mxu0 0
  %328 = vmatpush1.bf16.msra.mxu0 0
  %329 = vmatprep.subr.bf16.mxu0 0
  %330 = vmatpush1.bf16.msra.mxu0 0
  %331 = vmatprep.subr.bf16.mxu0 0
  %332 = vmatpush1.bf16.msra.mxu0 0
  %333 = vmatprep.subr.bf16.mxu0 0
  %334 = vmatpush1.bf16.msra.mxu0 0
  %335 = vmatprep.subr.bf16.mxu0 0
  %336 = vmatpush1.bf16.msra.mxu0 0
  %337 = vmatprep.subr.bf16.mxu0 0
  %338 = vmatpush1.bf16.msra.mxu0 0
  %339 = vmatprep.subr.bf16.mxu0 0
  %340 = vmatpush1.bf16.msra.mxu0 0
  %341 = vmatprep.subr.bf16.mxu0 0
  %342 = vmatpush1.bf16.msra.mxu0 0
  %343 = vmatprep.mubr.bf16.mxu0 0
  %344 = vmatmul.mubr.bf16.gmra.mrb[0].mxu0 %v300
  %v345 = vpop.f32.mrb[0].mxu0
  %v346 = vadd.f32 %v236, %v345
  %v347 = vpop.f32.mrb[0].mxu0
  %v348 = vpop.f32.mrb[0].mxu0
  %v349 = vadd.f32 %v239, %v348
  %v350 = vpop.f32.mrb[0].mxu0
  %351 = vmatprep.mubr.bf16.mxu0 0
  %352 = vmatmul.mubr.bf16.gmra.mrb[0].mxu0 %v302
  %v353 = vpop.f32.mrb[0].mxu0
  %v354 = vadd.f32 %v244, %v353
  %v355 = vpop.f32.mrb[0].mxu0
  %v356 = vpop.f32.mrb[0].mxu0
  %v357 = vadd.f32 %v247, %v356
  %v358 = vpop.f32.mrb[0].mxu0
  %359 = vmatprep.mubr.bf16.mxu0 0
  %360 = vmatmul.mubr.bf16.gmra.mrb[0].mxu0 %v304
  %v361 = vpop.f32.mrb[0].mxu0
  %v362 = vadd.f32 %v252, %v361
  %v363 = vpop.f32.mrb[0].mxu0
  %v364 = vpop.f32.mrb[0].mxu0
  %v365 = vadd.f32 %v255, %v364
  %v366 = vpop.f32.mrb[0].mxu0
  %367 = vmatprep.mubr.bf16.mxu0 0
  %368 = vmatmul.mubr.bf16.gmra.mrb[0].mxu0 %v306
  %v369 = vpop.f32.mrb[0].mxu0
  %v370 = vadd.f32 %v260, %v369
  %v371 = vpop.f32.mrb[0].mxu0
  %v372 = vpop.f32.mrb[0].mxu0
  %v373 = vadd.f32 %v263, %v372
  %v374 = vpop.f32.mrb[0].mxu0
  %375 = vmatprep.mubr.bf16.mxu0 0
  %376 = vmatmul.mubr.bf16.gmra.mrb[0].mxu0 %v309
  %v377 = vpop.f32.mrb[0].mxu0
  %v378 = vadd.f32 %v268, %v377
  %v379 = vpop.f32.mrb[0].mxu0
  %v380 = vpop.f32.mrb[0].mxu0
  %v381 = vpop.f32.mrb[0].mxu0
  %382 = vdwg.mxu0
  %v383 = vld [vmem:[#allocation2] sm:$0xe]
  %s384 = scalar_lea.vmem %s2, 64
  %v385 = vld [vmem:[%s384] sm:$0xf]
  %v386 = vld [vmem:[%s384 + $0x4] sm:$0xf]
  %v387 = vld [vmem:[%s384 + $0x8] sm:$0xf]
  %v388 = vld [vmem:[%s384 + $0xc] sm:$0xf]
  %v389 = vld [vmem:[%s384 + $0x10] sm:$0xf]
  %v390 = vld [vmem:[%s384 + $0x14] sm:$0xf]
  %v391 = vld [vmem:[%s384 + $0x18] sm:$0xf]
  %v392 = vld [vmem:[%s384 + $0x1c] sm:$0xf]
  %v394 = vunpack.c.l.b16 %v383
  %v395 = vpack.c.b16 %v108, %v394
  %vm396 = vcmask 1046528
  %v397 = vrot.slane %v395, 1
  %v398 = vrot.slane %v117, 1
  %v399 = vsel %vm396, %v397, %v398
  %v400 = vrot.slane %v118, 1
  %v401 = vsel %vm396, %v398, %v400
  %v402 = vrot.slane %v119, 1
  %v403 = vsel %vm396, %v400, %v402
  %v404 = vrot.slane %v120, 1
  %v405 = vsel %vm396, %v402, %v404
  %v414 = vunpack.c.l.b16 %v385
  %v415 = vunpack.c.l.b16 %v386
  %v416 = vunpack.c.l.b16 %v387
  %v417 = vunpack.c.l.b16 %v388
  %v418 = vunpack.c.l.b16 %v389
  %v419 = vunpack.c.l.b16 %v390
  %v420 = vunpack.c.l.b16 %v391
  %v421 = vunpack.c.l.b16 %v392
  %v422 = vpack.c.b16 %v415, %v414
  %v423 = vpack.c.b16 %v417, %v416
  %v424 = vpack.c.b16 %v419, %v418
  %v425 = vpack.c.b16 %v421, %v420
  %v431 = vsel %vm185, %v399, 0
  %v434 = vsel %vm185, %v401, 0
  %v437 = vsel %vm185, %v403, 0
  %v440 = vsel %vm185, %v405, 0
  %v443 = vsel %vm185, %v404, 0
  %445 = vmatprep.subr.bf16.mxu0 0
  %446 = vmatpush1.bf16.msra.mxu0 %v422
  %447 = vmatprep.subr.bf16.mxu0 0
  %448 = vmatpush1.bf16.msra.mxu0 %v423
  %449 = vmatprep.subr.bf16.mxu0 0
  %450 = vmatpush1.bf16.msra.mxu0 %v424
  %451 = vmatprep.subr.bf16.mxu0 0
  %452 = vmatpush1.bf16.msra.mxu0 %v425
  %453 = vmatprep.subr.bf16.mxu0 0
  %454 = vmatpush1.bf16.msra.mxu0 0
  %455 = vmatprep.subr.bf16.mxu0 0
  %456 = vmatpush1.bf16.msra.mxu0 0
  %457 = vmatprep.subr.bf16.mxu0 0
  %458 = vmatpush1.bf16.msra.mxu0 0
  %459 = vmatprep.subr.bf16.mxu0 0
  %460 = vmatpush1.bf16.msra.mxu0 0
  %461 = vmatprep.subr.bf16.mxu0 0
  %462 = vmatpush1.bf16.msra.mxu0 0
  %463 = vmatprep.subr.bf16.mxu0 0
  %464 = vmatpush1.bf16.msra.mxu0 0
  %465 = vmatprep.subr.bf16.mxu0 0
  %466 = vmatpush1.bf16.msra.mxu0 0
  %467 = vmatprep.subr.bf16.mxu0 0
  %468 = vmatpush1.bf16.msra.mxu0 0
  %469 = vmatprep.subr.bf16.mxu0 0
  %470 = vmatpush1.bf16.msra.mxu0 0
  %471 = vmatprep.subr.bf16.mxu0 0
  %472 = vmatpush1.bf16.msra.mxu0 0
  %473 = vmatprep.subr.bf16.mxu0 0
  %474 = vmatpush1.bf16.msra.mxu0 0
  %475 = vmatprep.subr.bf16.mxu0 0
  %476 = vmatpush1.bf16.msra.mxu0 0
  %477 = vmatprep.mubr.bf16.mxu0 0
  %478 = vmatmul.mubr.bf16.gmra.mrb[0].mxu0 %v431
  %v479 = vpop.f32.mrb[0].mxu0
  %v480 = vadd.f32 0.0, %v479
  %v481 = vpop.f32.mrb[0].mxu0
  %v482 = vpop.f32.mrb[0].mxu0
  %v483 = vadd.f32 0.0, %v482
  %v484 = vpop.f32.mrb[0].mxu0
  %485 = vmatprep.mubr.bf16.mxu0 0
  %486 = vmatmul.mubr.bf16.gmra.mrb[0].mxu0 %v434
  %v487 = vpop.f32.mrb[0].mxu0
  %v488 = vadd.f32 0.0, %v487
  %v489 = vpop.f32.mrb[0].mxu0
  %v490 = vpop.f32.mrb[0].mxu0
  %v491 = vadd.f32 0.0, %v490
  %v492 = vpop.f32.mrb[0].mxu0
  %493 = vmatprep.mubr.bf16.mxu0 0
  %494 = vmatmul.mubr.bf16.gmra.mrb[0].mxu0 %v437
  %v495 = vpop.f32.mrb[0].mxu0
  %v496 = vadd.f32 0.0, %v495
  %v497 = vpop.f32.mrb[0].mxu0
  %v498 = vpop.f32.mrb[0].mxu0
  %v499 = vadd.f32 0.0, %v498
  %v500 = vpop.f32.mrb[0].mxu0
  %501 = vmatprep.mubr.bf16.mxu0 0
  %502 = vmatmul.mubr.bf16.gmra.mrb[0].mxu0 %v440
  %v503 = vpop.f32.mrb[0].mxu0
  %v504 = vadd.f32 0.0, %v503
  %v505 = vpop.f32.mrb[0].mxu0
  %v506 = vpop.f32.mrb[0].mxu0
  %v507 = vadd.f32 0.0, %v506
  %v508 = vpop.f32.mrb[0].mxu0
  %509 = vmatprep.mubr.bf16.mxu0 0
  %510 = vmatmul.mubr.bf16.gmra.mrb[0].mxu0 %v443
  %v511 = vpop.f32.mrb[0].mxu0
  %v512 = vadd.f32 0.0, %v511
  %v513 = vpop.f32.mrb[0].mxu0
  %v514 = vpop.f32.mrb[0].mxu0
  %v515 = vpop.f32.mrb[0].mxu0
  %516 = vdwg.mxu0
  %v517 = vadd.f32 %v346, %v480
  %v518 = vadd.f32 %v349, %v483
  %v519 = vadd.f32 %v354, %v488
  %v520 = vadd.f32 %v357, %v491
  %v521 = vadd.f32 %v362, %v496
  %v522 = vadd.f32 %v365, %v499
  %v523 = vadd.f32 %v370, %v504
  %v524 = vadd.f32 %v373, %v507
  %v525 = vadd.f32 %v378, %v512
  %v526 = vld [vmem:[%s3] sm:$0x1]
  %v528 = vlaneseq
  %v529 = vshrl.u32 %v528, 7
  %v530 = vsub.s32 0, %v529
  %v531 = vrot.slane %v526, %v530
  %v533 = vadd.f32 %v517, %v531
  %v534 = vadd.f32 %v518, %v531
  %v535 = vadd.f32 %v519, %v531
  %v536 = vadd.f32 %v520, %v531
  %v537 = vadd.f32 %v521, %v531
  %v538 = vadd.f32 %v522, %v531
  %v539 = vadd.f32 %v523, %v531
  %v540 = vadd.f32 %v524, %v531
  %v541 = vadd.f32 %v525, %v531
  %v542 = vmax.f32 %v533, 0.0
  %v543 = vmax.f32 %v534, 0.0
  %v544 = vmax.f32 %v535, 0.0
  %v545 = vmax.f32 %v536, 0.0
  %v546 = vmax.f32 %v537, 0.0
  %v547 = vmax.f32 %v538, 0.0
  %v548 = vmax.f32 %v539, 0.0
  %v549 = vmax.f32 %v540, 0.0
  %v550 = vmax.f32 %v541, 0.0
  %s551 = smul.u32 0, 64
  %s552 = ssub.s32 %s551, 1
  %v553 = vlaneseq
  %v554 = vshrl.u32 %v553, 7
  %v555 = vadd.s32 %v554, 8
  %v556 = vadd.s32 %v554, 16
  %v557 = vadd.s32 %v554, 24
  %v558 = vadd.s32 %v554, 32
  %v559 = vadd.s32 %v554, 40
  %v560 = vadd.s32 %v554, 48
  %v561 = vadd.s32 %v554, 56
  %v562 = vadd.s32 %v554, 64
  %v563 = vstv %s552
  %v564 = vadd.s32 %v563, %v554
  %v565 = vadd.s32 %v563, %v555
  %v566 = vadd.s32 %v563, %v556
  %v567 = vadd.s32 %v563, %v557
  %v568 = vadd.s32 %v563, %v558
  %v569 = vadd.s32 %v563, %v559
  %v570 = vadd.s32 %v563, %v560
  %v571 = vadd.s32 %v563, %v561
  %v572 = vadd.s32 %v563, %v562
  %v573 = vadd.s32 %v564, 32
  %v574 = vadd.s32 %v565, 32
  %v575 = vadd.s32 %v566, 32
  %v576 = vadd.s32 %v567, 32
  %v577 = vadd.s32 %v568, 32
  %v578 = vadd.s32 %v569, 32
  %v579 = vadd.s32 %v570, 32
  %v580 = vadd.s32 %v571, 32
  %v581 = vadd.s32 %v572, 32
  %vm582 = vcmp.lt.s32.totalorder %v573, 0
  %v583 = vsub.s32 0, %v573
  %v584 = vsel %vm582, %v583, %v573
  %v585 = vshrl.u32 %v584, 5
  %v586 = vand.u32 %v584, 31
  %v587 = vsub.s32 0, %v586
  %v588 = vsel %vm582, %v587, %v586
  %vm589 = vcmp.lt.s32.totalorder %v574, 0
  %v590 = vsub.s32 0, %v574
  %v591 = vsel %vm589, %v590, %v574
  %v592 = vshrl.u32 %v591, 5
  %v593 = vand.u32 %v591, 31
  %v594 = vsub.s32 0, %v593
  %v595 = vsel %vm589, %v594, %v593
  %vm596 = vcmp.lt.s32.totalorder %v575, 0
  %v597 = vsub.s32 0, %v575
  %v598 = vsel %vm596, %v597, %v575
  %v599 = vshrl.u32 %v598, 5
  %v600 = vand.u32 %v598, 31
  %v601 = vsub.s32 0, %v600
  %v602 = vsel %vm596, %v601, %v600
  %vm603 = vcmp.lt.s32.totalorder %v576, 0
  %v604 = vsub.s32 0, %v576
  %v605 = vsel %vm603, %v604, %v576
  %v606 = vshrl.u32 %v605, 5
  %v607 = vand.u32 %v605, 31
  %v608 = vsub.s32 0, %v607
  %v609 = vsel %vm603, %v608, %v607
  %vm610 = vcmp.lt.s32.totalorder %v577, 0
  %v611 = vsub.s32 0, %v577
  %v612 = vsel %vm610, %v611, %v577
  %v613 = vshrl.u32 %v612, 5
  %v614 = vand.u32 %v612, 31
  %v615 = vsub.s32 0, %v614
  %v616 = vsel %vm610, %v615, %v614
  %vm617 = vcmp.lt.s32.totalorder %v578, 0
  %v618 = vsub.s32 0, %v578
  %v619 = vsel %vm617, %v618, %v578
  %v620 = vshrl.u32 %v619, 5
  %v621 = vand.u32 %v619, 31
  %v622 = vsub.s32 0, %v621
  %v623 = vsel %vm617, %v622, %v621
  %vm624 = vcmp.lt.s32.totalorder %v579, 0
  %v625 = vsub.s32 0, %v579
  %v626 = vsel %vm624, %v625, %v579
  %v627 = vshrl.u32 %v626, 5
  %v628 = vand.u32 %v626, 31
  %v629 = vsub.s32 0, %v628
  %v630 = vsel %vm624, %v629, %v628
  %vm631 = vcmp.lt.s32.totalorder %v580, 0
  %v632 = vsub.s32 0, %v580
  %v633 = vsel %vm631, %v632, %v580
  %v634 = vshrl.u32 %v633, 5
  %v635 = vand.u32 %v633, 31
  %v636 = vsub.s32 0, %v635
  %v637 = vsel %vm631, %v636, %v635
  %vm638 = vcmp.lt.s32.totalorder %v581, 0
  %v639 = vsub.s32 0, %v581
  %v640 = vsel %vm638, %v639, %v581
  %v641 = vshrl.u32 %v640, 5
  %v642 = vand.u32 %v640, 31
  %v643 = vsub.s32 0, %v642
  %v644 = vsel %vm638, %v643, %v642
  %vm645 = vcmp.ne.s32.totalorder %v588, 0
  %vm646 = vcmp.ne.s32.totalorder %v595, 0
  %vm647 = vcmp.ne.s32.totalorder %v602, 0
  %vm648 = vcmp.ne.s32.totalorder %v609, 0
  %vm649 = vcmp.ne.s32.totalorder %v616, 0
  %vm650 = vcmp.ne.s32.totalorder %v623, 0
  %vm651 = vcmp.ne.s32.totalorder %v630, 0
  %vm652 = vcmp.ne.s32.totalorder %v637, 0
  %vm653 = vcmp.ne.s32.totalorder %v644, 0
  %vm654 = vcmp.lt.s32.totalorder %v588, 0
  %vm655 = vcmp.lt.s32.totalorder %v595, 0
  %vm656 = vcmp.lt.s32.totalorder %v602, 0
  %vm657 = vcmp.lt.s32.totalorder %v609, 0
  %vm658 = vcmp.lt.s32.totalorder %v616, 0
  %vm659 = vcmp.lt.s32.totalorder %v623, 0
  %vm660 = vcmp.lt.s32.totalorder %v630, 0
  %vm661 = vcmp.lt.s32.totalorder %v637, 0
  %vm662 = vcmp.lt.s32.totalorder %v644, 0
  %vm663 = vmand %vm654, %vm645
  %vm664 = vmand %vm655, %vm646
  %vm665 = vmand %vm656, %vm647
  %vm666 = vmand %vm657, %vm648
  %vm667 = vmand %vm658, %vm649
  %vm668 = vmand %vm659, %vm650
  %vm669 = vmand %vm660, %vm651
  %vm670 = vmand %vm661, %vm652
  %vm671 = vmand %vm662, %vm653
  %v672 = vadd.s32 %v588, 32
  %v673 = vadd.s32 %v595, 32
  %v674 = vadd.s32 %v602, 32
  %v675 = vadd.s32 %v609, 32
  %v676 = vadd.s32 %v616, 32
  %v677 = vadd.s32 %v623, 32
  %v678 = vadd.s32 %v630, 32
  %v679 = vadd.s32 %v637, 32
  %v680 = vadd.s32 %v644, 32
  %v681 = vsel %vm663, %v672, %v588
  %v682 = vsel %vm664, %v673, %v595
  %v683 = vsel %vm665, %v674, %v602
  %v684 = vsel %vm666, %v675, %v609
  %v685 = vsel %vm667, %v676, %v616
  %v686 = vsel %vm668, %v677, %v623
  %v687 = vsel %vm669, %v678, %v630
  %v688 = vsel %vm670, %v679, %v637
  %v689 = vsel %vm671, %v680, %v644
  %vm690 = vcmp.lt.s32.totalorder %v681, 16
  %vm691 = vcmp.lt.s32.totalorder %v682, 16
  %vm692 = vcmp.lt.s32.totalorder %v683, 16
  %vm693 = vcmp.lt.s32.totalorder %v684, 16
  %vm694 = vcmp.lt.s32.totalorder %v685, 16
  %vm695 = vcmp.lt.s32.totalorder %v686, 16
  %vm696 = vcmp.lt.s32.totalorder %v687, 16
  %vm697 = vcmp.lt.s32.totalorder %v688, 16
  %vm698 = vcmp.lt.s32.totalorder %v689, 16
  %v699 = vsel %vm690, 1, 0
  %v700 = vsel %vm691, 1, 0
  %v701 = vsel %vm692, 1, 0
  %v702 = vsel %vm693, 1, 0
  %v703 = vsel %vm694, 1, 0
  %v704 = vsel %vm695, 1, 0
  %v705 = vsel %vm696, 1, 0
  %v706 = vsel %vm697, 1, 0
  %v707 = vsel %vm698, 1, 0
  %vm708 = vcmp.eq.s32.totalorder %v699, 1
  %vm709 = vcmp.eq.s32.totalorder %v700, 1
  %vm710 = vcmp.eq.s32.totalorder %v701, 1
  %vm711 = vcmp.eq.s32.totalorder %v702, 1
  %vm712 = vcmp.eq.s32.totalorder %v703, 1
  %vm713 = vcmp.eq.s32.totalorder %v704, 1
  %vm714 = vcmp.eq.s32.totalorder %v705, 1
  %vm715 = vcmp.eq.s32.totalorder %v706, 1
  %vm716 = vcmp.eq.s32.totalorder %v707, 1
  %v717 = vsel %vm708, %v542, 0.0
  %v718 = vsel %vm709, %v543, 0.0
  %v719 = vsel %vm710, %v544, 0.0
  %v720 = vsel %vm711, %v545, 0.0
  %v721 = vsel %vm712, %v546, 0.0
  %v722 = vsel %vm713, %v547, 0.0
  %v723 = vsel %vm714, %v548, 0.0
  %v724 = vsel %vm715, %v549, 0.0
  %v725 = vsel %vm716, %v550, 0.0
  %v726 = vpack.c.bf16 %v718, %v717
  %v727 = vpack.c.bf16 %v720, %v719
  %v728 = vpack.c.bf16 %v722, %v721
  %v729 = vpack.c.bf16 %v724, %v723
  %v730 = vpack.c.bf16 %v725, %v725
  %v736 = vunpack.c.l.b16 %v726
  %v737 = vunpack.c.h.b16 %v726
  %v738 = vunpack.c.l.b16 %v727
  %v739 = vunpack.c.h.b16 %v727
  %v740 = vunpack.c.l.b16 %v728
  %v741 = vunpack.c.h.b16 %v728
  %v742 = vunpack.c.l.b16 %v729
  %v743 = vunpack.c.h.b16 %v729
  %v744 = vunpack.c.l.b16 %v730
  %v745 = vpack.c.b16 %v736, %v736
  %v746 = vpack.c.b16 %v737, %v737
  %v747 = vpack.c.b16 %v738, %v738
  %v748 = vpack.c.b16 %v739, %v739
  %v749 = vpack.c.b16 %v740, %v740
  %v750 = vpack.c.b16 %v741, %v741
  %v751 = vpack.c.b16 %v742, %v742
  %v752 = vpack.c.b16 %v743, %v743
  %v753 = vpack.c.b16 %v744, %v744
  %763 = vst [vmem:[#allocation3] sm:$0xf] %v745
  %764 = vst [vmem:[#allocation3 + $0x4] sm:$0xf] %v746
  %765 = vst [vmem:[#allocation3 + $0x8] sm:$0xf] %v747
  %766 = vst [vmem:[#allocation3 + $0xc] sm:$0xf] %v748
  %767 = vst [vmem:[#allocation3 + $0x10] sm:$0xf] %v749
  %768 = vst [vmem:[#allocation3 + $0x14] sm:$0xf] %v750
  %769 = vst [vmem:[#allocation3 + $0x18] sm:$0xf] %v751
  %770 = vst [vmem:[#allocation3 + $0x1c] sm:$0xf] %v752
  %771 = vst [vmem:[#allocation3 + $0x20] sm:$0x1] %v753
  %v772 = vld [vmem:[#allocation3] sm:$0xf]
  %v773 = vld [vmem:[#allocation3 + $0x4] sm:$0xf]
  %v774 = vld [vmem:[#allocation3 + $0x8] sm:$0xf]
  %v775 = vld [vmem:[#allocation3 + $0xc] sm:$0xf]
  %v776 = vld [vmem:[#allocation3 + $0x10] sm:$0xf]
  %v777 = vld [vmem:[#allocation3 + $0x14] sm:$0xf]
  %v778 = vld [vmem:[#allocation3 + $0x18] sm:$0xf]
  %v779 = vld [vmem:[#allocation3 + $0x1c] sm:$0xf]
  %v780 = vld [vmem:[%s4] sm:$0xf]
  %v781 = vld [vmem:[%s4 + $0x4] sm:$0xf]
  %v782 = vld [vmem:[%s4 + $0x8] sm:$0xf]
  %v783 = vld [vmem:[%s4 + $0xc] sm:$0xf]
  %v784 = vld [vmem:[%s4 + $0x10] sm:$0xf]
  %v785 = vld [vmem:[%s4 + $0x14] sm:$0xf]
  %v786 = vld [vmem:[%s4 + $0x18] sm:$0xf]
  %v787 = vld [vmem:[%s4 + $0x1c] sm:$0xf]
  %v788 = vld [vmem:[%s4 + $0x20] sm:$0xf]
  %v789 = vld [vmem:[%s4 + $0x24] sm:$0xf]
  %v790 = vld [vmem:[%s4 + $0x28] sm:$0xf]
  %v791 = vld [vmem:[%s4 + $0x2c] sm:$0xf]
  %v792 = vld [vmem:[%s4 + $0x30] sm:$0xf]
  %v793 = vld [vmem:[%s4 + $0x34] sm:$0xf]
  %v794 = vld [vmem:[%s4 + $0x38] sm:$0xf]
  %v795 = vld [vmem:[%s4 + $0x3c] sm:$0xf]
  %v796 = vld [vmem:[#allocation3 + $0x20] sm:$0x1]
  %s797 = scalar_lea.vmem %s4, 64
  %v798 = vld [vmem:[%s797] sm:$0xf]
  %v799 = vld [vmem:[%s797 + $0x4] sm:$0xf]
  %v800 = vld [vmem:[%s797 + $0x8] sm:$0xf]
  %v801 = vld [vmem:[%s797 + $0xc] sm:$0xf]
  %v802 = vld [vmem:[%s797 + $0x10] sm:$0xf]
  %v803 = vld [vmem:[%s797 + $0x14] sm:$0xf]
  %v804 = vld [vmem:[%s797 + $0x18] sm:$0xf]
  %v805 = vld [vmem:[%s797 + $0x1c] sm:$0xf]
  %v806 = vld [vmem:[%s797 + $0x20] sm:$0xf]
  %v807 = vld [vmem:[%s797 + $0x24] sm:$0xf]
  %v808 = vld [vmem:[%s797 + $0x28] sm:$0xf]
  %v809 = vld [vmem:[%s797 + $0x2c] sm:$0xf]
  %v810 = vld [vmem:[%s797 + $0x30] sm:$0xf]
  %v811 = vld [vmem:[%s797 + $0x34] sm:$0xf]
  %v812 = vld [vmem:[%s797 + $0x38] sm:$0xf]
  %v813 = vld [vmem:[%s797 + $0x3c] sm:$0xf]
  %v823 = vunpack.c.l.b16 %v772
  %v824 = vunpack.c.l.b16 %v773
  %v825 = vunpack.c.l.b16 %v774
  %v826 = vunpack.c.l.b16 %v775
  %v827 = vunpack.c.l.b16 %v776
  %v828 = vunpack.c.l.b16 %v777
  %v829 = vunpack.c.l.b16 %v778
  %v830 = vunpack.c.l.b16 %v779
  %v831 = vunpack.c.l.b16 %v796
  %v832 = vpack.c.b16 %v824, %v823
  %v833 = vpack.c.b16 %v826, %v825
  %v834 = vpack.c.b16 %v828, %v827
  %v835 = vpack.c.b16 %v830, %v829
  %v836 = vpack.c.b16 %v831, %v831
  %v838 = vshrl.u32 %v832, 16
  %v840 = vshll.u32 %v832, 16
  %v842 = vrot.slane %v840, 1
  %v843 = vor.u32 %v838, %v842
  %v845 = vshll.u32 %v833, 16
  %v847 = vrot.slane %v845, 1
  %v848 = vsel %vm121, %v843, %v847
  %v849 = vshrl.u32 %v833, 16
  %v851 = vor.u32 %v849, %v847
  %v853 = vshll.u32 %v834, 16
  %v855 = vrot.slane %v853, 1
  %v856 = vsel %vm121, %v851, %v855
  %v857 = vshrl.u32 %v834, 16
  %v859 = vor.u32 %v857, %v855
  %v861 = vshll.u32 %v835, 16
  %v863 = vrot.slane %v861, 1
  %v864 = vsel %vm121, %v859, %v863
  %v865 = vshrl.u32 %v835, 16
  %v867 = vor.u32 %v865, %v863
  %v869 = vshll.u32 %v836, 16
  %v871 = vrot.slane %v869, 1
  %v872 = vsel %vm121, %v867, %v871
  %v893 = vunpack.c.l.b16 %v798
  %v894 = vunpack.c.l.b16 %v799
  %v895 = vunpack.c.l.b16 %v800
  %v896 = vunpack.c.l.b16 %v801
  %v897 = vunpack.c.l.b16 %v802
  %v898 = vunpack.c.l.b16 %v803
  %v899 = vunpack.c.l.b16 %v804
  %v900 = vunpack.c.l.b16 %v805
  %v901 = vunpack.c.l.b16 %v806
  %v902 = vunpack.c.l.b16 %v807
  %v903 = vunpack.c.l.b16 %v808
  %v904 = vunpack.c.l.b16 %v809
  %v905 = vunpack.c.l.b16 %v810
  %v906 = vunpack.c.l.b16 %v811
  %v907 = vunpack.c.l.b16 %v812
  %v908 = vunpack.c.l.b16 %v813
  %v909 = vpack.c.b16 %v894, %v893
  %v910 = vpack.c.b16 %v896, %v895
  %v911 = vpack.c.b16 %v898, %v897
  %v912 = vpack.c.b16 %v900, %v899
  %v913 = vpack.c.b16 %v902, %v901
  %v914 = vpack.c.b16 %v904, %v903
  %v915 = vpack.c.b16 %v906, %v905
  %v916 = vpack.c.b16 %v908, %v907
  %925 = vmatprep.subr.bf16.mxu0 0
  %926 = vmatpush1.bf16.msra.mxu0 %v909
  %927 = vmatprep.subr.bf16.mxu0 0
  %928 = vmatpush1.bf16.msra.mxu0 %v910
  %929 = vmatprep.subr.bf16.mxu0 0
  %930 = vmatpush1.bf16.msra.mxu0 %v911
  %931 = vmatprep.subr.bf16.mxu0 0
  %932 = vmatpush1.bf16.msra.mxu0 %v912
  %933 = vmatprep.subr.bf16.mxu0 0
  %934 = vmatpush1.bf16.msra.mxu0 %v913
  %935 = vmatprep.subr.bf16.mxu0 0
  %936 = vmatpush1.bf16.msra.mxu0 %v914
  %937 = vmatprep.subr.bf16.mxu0 0
  %938 = vmatpush1.bf16.msra.mxu0 %v915
  %939 = vmatprep.subr.bf16.mxu0 0
  %940 = vmatpush1.bf16.msra.mxu0 %v916
  %941 = vmatprep.subr.bf16.mxu0 0
  %942 = vmatpush1.bf16.msra.mxu0 0
  %943 = vmatprep.subr.bf16.mxu0 0
  %944 = vmatpush1.bf16.msra.mxu0 0
  %945 = vmatprep.subr.bf16.mxu0 0
  %946 = vmatpush1.bf16.msra.mxu0 0
  %947 = vmatprep.subr.bf16.mxu0 0
  %948 = vmatpush1.bf16.msra.mxu0 0
  %949 = vmatprep.subr.bf16.mxu0 0
  %950 = vmatpush1.bf16.msra.mxu0 0
  %951 = vmatprep.subr.bf16.mxu0 0
  %952 = vmatpush1.bf16.msra.mxu0 0
  %953 = vmatprep.subr.bf16.mxu0 0
  %954 = vmatpush1.bf16.msra.mxu0 0
  %955 = vmatprep.subr.bf16.mxu0 0
  %956 = vmatpush1.bf16.msra.mxu0 0
  %957 = vmatprep.mubr.bf16.mxu0 0
  %958 = vmatmul.mubr.bf16.gmra.mrb[0].mxu0 %v848
  %v959 = vpop.f32.mrb[0].mxu0
  %v960 = vadd.f32 0.0, %v959
  %v961 = vpop.f32.mrb[0].mxu0
  %v962 = vpop.f32.mrb[0].mxu0
  %v963 = vadd.f32 0.0, %v962
  %v964 = vpop.f32.mrb[0].mxu0
  %965 = vmatprep.mubr.bf16.mxu0 0
  %966 = vmatmul.mubr.bf16.gmra.mrb[0].mxu0 %v856
  %v967 = vpop.f32.mrb[0].mxu0
  %v968 = vadd.f32 0.0, %v967
  %v969 = vpop.f32.mrb[0].mxu0
  %v970 = vpop.f32.mrb[0].mxu0
  %v971 = vadd.f32 0.0, %v970
  %v972 = vpop.f32.mrb[0].mxu0
  %973 = vmatprep.mubr.bf16.mxu0 0
  %974 = vmatmul.mubr.bf16.gmra.mrb[0].mxu0 %v864
  %v975 = vpop.f32.mrb[0].mxu0
  %v976 = vadd.f32 0.0, %v975
  %v977 = vpop.f32.mrb[0].mxu0
  %v978 = vpop.f32.mrb[0].mxu0
  %v979 = vadd.f32 0.0, %v978
  %v980 = vpop.f32.mrb[0].mxu0
  %981 = vmatprep.mubr.bf16.mxu0 0
  %982 = vmatmul.mubr.bf16.gmra.mrb[0].mxu0 %v872
  %v983 = vpop.f32.mrb[0].mxu0
  %v984 = vadd.f32 0.0, %v983
  %v985 = vpop.f32.mrb[0].mxu0
  %v986 = vpop.f32.mrb[0].mxu0
  %v987 = vadd.f32 0.0, %v986
  %v988 = vpop.f32.mrb[0].mxu0
  %989 = vdwg.mxu0
  %v1010 = vunpack.c.l.b16 %v780
  %v1011 = vunpack.c.l.b16 %v781
  %v1012 = vunpack.c.l.b16 %v782
  %v1013 = vunpack.c.l.b16 %v783
  %v1014 = vunpack.c.l.b16 %v784
  %v1015 = vunpack.c.l.b16 %v785
  %v1016 = vunpack.c.l.b16 %v786
  %v1017 = vunpack.c.l.b16 %v787
  %v1018 = vunpack.c.l.b16 %v788
  %v1019 = vunpack.c.l.b16 %v789
  %v1020 = vunpack.c.l.b16 %v790
  %v1021 = vunpack.c.l.b16 %v791
  %v1022 = vunpack.c.l.b16 %v792
  %v1023 = vunpack.c.l.b16 %v793
  %v1024 = vunpack.c.l.b16 %v794
  %v1025 = vunpack.c.l.b16 %v795
  %v1026 = vpack.c.b16 %v1011, %v1010
  %v1027 = vpack.c.b16 %v1013, %v1012
  %v1028 = vpack.c.b16 %v1015, %v1014
  %v1029 = vpack.c.b16 %v1017, %v1016
  %v1030 = vpack.c.b16 %v1019, %v1018
  %v1031 = vpack.c.b16 %v1021, %v1020
  %v1032 = vpack.c.b16 %v1023, %v1022
  %v1033 = vpack.c.b16 %v1025, %v1024
  %1042 = vmatprep.subr.bf16.mxu0 0
  %1043 = vmatpush1.bf16.msra.mxu0 %v1026
  %1044 = vmatprep.subr.bf16.mxu0 0
  %1045 = vmatpush1.bf16.msra.mxu0 %v1027
  %1046 = vmatprep.subr.bf16.mxu0 0
  %1047 = vmatpush1.bf16.msra.mxu0 %v1028
  %1048 = vmatprep.subr.bf16.mxu0 0
  %1049 = vmatpush1.bf16.msra.mxu0 %v1029
  %1050 = vmatprep.subr.bf16.mxu0 0
  %1051 = vmatpush1.bf16.msra.mxu0 %v1030
  %1052 = vmatprep.subr.bf16.mxu0 0
  %1053 = vmatpush1.bf16.msra.mxu0 %v1031
  %1054 = vmatprep.subr.bf16.mxu0 0
  %1055 = vmatpush1.bf16.msra.mxu0 %v1032
  %1056 = vmatprep.subr.bf16.mxu0 0
  %1057 = vmatpush1.bf16.msra.mxu0 %v1033
  %1058 = vmatprep.subr.bf16.mxu0 0
  %1059 = vmatpush1.bf16.msra.mxu0 0
  %1060 = vmatprep.subr.bf16.mxu0 0
  %1061 = vmatpush1.bf16.msra.mxu0 0
  %1062 = vmatprep.subr.bf16.mxu0 0
  %1063 = vmatpush1.bf16.msra.mxu0 0
  %1064 = vmatprep.subr.bf16.mxu0 0
  %1065 = vmatpush1.bf16.msra.mxu0 0
  %1066 = vmatprep.subr.bf16.mxu0 0
  %1067 = vmatpush1.bf16.msra.mxu0 0
  %1068 = vmatprep.subr.bf16.mxu0 0
  %1069 = vmatpush1.bf16.msra.mxu0 0
  %1070 = vmatprep.subr.bf16.mxu0 0
  %1071 = vmatpush1.bf16.msra.mxu0 0
  %1072 = vmatprep.subr.bf16.mxu0 0
  %1073 = vmatpush1.bf16.msra.mxu0 0
  %1074 = vmatprep.mubr.bf16.mxu0 0
  %1075 = vmatmul.mubr.bf16.gmra.mrb[0].mxu0 %v832
  %v1076 = vpop.f32.mrb[0].mxu0
  %v1077 = vadd.f32 %v960, %v1076
  %v1078 = vpop.f32.mrb[0].mxu0
  %v1079 = vpop.f32.mrb[0].mxu0
  %v1080 = vadd.f32 %v963, %v1079
  %v1081 = vpop.f32.mrb[0].mxu0
  %1082 = vmatprep.mubr.bf16.mxu0 0
  %1083 = vmatmul.mubr.bf16.gmra.mrb[0].mxu0 %v833
  %v1084 = vpop.f32.mrb[0].mxu0
  %v1085 = vadd.f32 %v968, %v1084
  %v1086 = vpop.f32.mrb[0].mxu0
  %v1087 = vpop.f32.mrb[0].mxu0
  %v1088 = vadd.f32 %v971, %v1087
  %v1089 = vpop.f32.mrb[0].mxu0
  %1090 = vmatprep.mubr.bf16.mxu0 0
  %1091 = vmatmul.mubr.bf16.gmra.mrb[0].mxu0 %v834
  %v1092 = vpop.f32.mrb[0].mxu0
  %v1093 = vadd.f32 %v976, %v1092
  %v1094 = vpop.f32.mrb[0].mxu0
  %v1095 = vpop.f32.mrb[0].mxu0
  %v1096 = vadd.f32 %v979, %v1095
  %v1097 = vpop.f32.mrb[0].mxu0
  %1098 = vmatprep.mubr.bf16.mxu0 0
  %1099 = vmatmul.mubr.bf16.gmra.mrb[0].mxu0 %v835
  %v1100 = vpop.f32.mrb[0].mxu0
  %v1101 = vadd.f32 %v984, %v1100
  %v1102 = vpop.f32.mrb[0].mxu0
  %v1103 = vpop.f32.mrb[0].mxu0
  %v1104 = vadd.f32 %v987, %v1103
  %v1105 = vpop.f32.mrb[0].mxu0
  %1106 = vdwg.mxu0
  %v1107 = vld [vmem:[#allocation3] sm:$0xe]
  %s1108 = scalar_lea.vmem %s4, 128
  %v1109 = vld [vmem:[%s1108] sm:$0xf]
  %v1110 = vld [vmem:[%s1108 + $0x4] sm:$0xf]
  %v1111 = vld [vmem:[%s1108 + $0x8] sm:$0xf]
  %v1112 = vld [vmem:[%s1108 + $0xc] sm:$0xf]
  %v1113 = vld [vmem:[%s1108 + $0x10] sm:$0xf]
  %v1114 = vld [vmem:[%s1108 + $0x14] sm:$0xf]
  %v1115 = vld [vmem:[%s1108 + $0x18] sm:$0xf]
  %v1116 = vld [vmem:[%s1108 + $0x1c] sm:$0xf]
  %v1117 = vld [vmem:[%s1108 + $0x20] sm:$0xf]
  %v1118 = vld [vmem:[%s1108 + $0x24] sm:$0xf]
  %v1119 = vld [vmem:[%s1108 + $0x28] sm:$0xf]
  %v1120 = vld [vmem:[%s1108 + $0x2c] sm:$0xf]
  %v1121 = vld [vmem:[%s1108 + $0x30] sm:$0xf]
  %v1122 = vld [vmem:[%s1108 + $0x34] sm:$0xf]
  %v1123 = vld [vmem:[%s1108 + $0x38] sm:$0xf]
  %v1124 = vld [vmem:[%s1108 + $0x3c] sm:$0xf]
  %v1126 = vunpack.c.l.b16 %v1107
  %v1127 = vpack.c.b16 %v824, %v1126
  %v1128 = vrot.slane %v1127, 1
  %v1129 = vrot.slane %v833, 1
  %v1130 = vsel %vm396, %v1128, %v1129
  %v1131 = vrot.slane %v834, 1
  %v1132 = vsel %vm396, %v1129, %v1131
  %v1133 = vrot.slane %v835, 1
  %v1134 = vsel %vm396, %v1131, %v1133
  %v1135 = vrot.slane %v836, 1
  %v1136 = vsel %vm396, %v1133, %v1135
  %v1157 = vunpack.c.l.b16 %v1109
  %v1158 = vunpack.c.l.b16 %v1110
  %v1159 = vunpack.c.l.b16 %v1111
  %v1160 = vunpack.c.l.b16 %v1112
  %v1161 = vunpack.c.l.b16 %v1113
  %v1162 = vunpack.c.l.b16 %v1114
  %v1163 = vunpack.c.l.b16 %v1115
  %v1164 = vunpack.c.l.b16 %v1116
  %v1165 = vunpack.c.l.b16 %v1117
  %v1166 = vunpack.c.l.b16 %v1118
  %v1167 = vunpack.c.l.b16 %v1119
  %v1168 = vunpack.c.l.b16 %v1120
  %v1169 = vunpack.c.l.b16 %v1121
  %v1170 = vunpack.c.l.b16 %v1122
  %v1171 = vunpack.c.l.b16 %v1123
  %v1172 = vunpack.c.l.b16 %v1124
  %v1173 = vpack.c.b16 %v1158, %v1157
  %v1174 = vpack.c.b16 %v1160, %v1159
  %v1175 = vpack.c.b16 %v1162, %v1161
  %v1176 = vpack.c.b16 %v1164, %v1163
  %v1177 = vpack.c.b16 %v1166, %v1165
  %v1178 = vpack.c.b16 %v1168, %v1167
  %v1179 = vpack.c.b16 %v1170, %v1169
  %v1180 = vpack.c.b16 %v1172, %v1171
  %1189 = vmatprep.subr.bf16.mxu0 0
  %1190 = vmatpush1.bf16.msra.mxu0 %v1173
  %1191 = vmatprep.subr.bf16.mxu0 0
  %1192 = vmatpush1.bf16.msra.mxu0 %v1174
  %1193 = vmatprep.subr.bf16.mxu0 0
  %1194 = vmatpush1.bf16.msra.mxu0 %v1175
  %1195 = vmatprep.subr.bf16.mxu0 0
  %1196 = vmatpush1.bf16.msra.mxu0 %v1176
  %1197 = vmatprep.subr.bf16.mxu0 0
  %1198 = vmatpush1.bf16.msra.mxu0 %v1177
  %1199 = vmatprep.subr.bf16.mxu0 0
  %1200 = vmatpush1.bf16.msra.mxu0 %v1178
  %1201 = vmatprep.subr.bf16.mxu0 0
  %1202 = vmatpush1.bf16.msra.mxu0 %v1179
  %1203 = vmatprep.subr.bf16.mxu0 0
  %1204 = vmatpush1.bf16.msra.mxu0 %v1180
  %1205 = vmatprep.subr.bf16.mxu0 0
  %1206 = vmatpush1.bf16.msra.mxu0 0
  %1207 = vmatprep.subr.bf16.mxu0 0
  %1208 = vmatpush1.bf16.msra.mxu0 0
  %1209 = vmatprep.subr.bf16.mxu0 0
  %1210 = vmatpush1.bf16.msra.mxu0 0
  %1211 = vmatprep.subr.bf16.mxu0 0
  %1212 = vmatpush1.bf16.msra.mxu0 0
  %1213 = vmatprep.subr.bf16.mxu0 0
  %1214 = vmatpush1.bf16.msra.mxu0 0
  %1215 = vmatprep.subr.bf16.mxu0 0
  %1216 = vmatpush1.bf16.msra.mxu0 0
  %1217 = vmatprep.subr.bf16.mxu0 0
  %1218 = vmatpush1.bf16.msra.mxu0 0
  %1219 = vmatprep.subr.bf16.mxu0 0
  %1220 = vmatpush1.bf16.msra.mxu0 0
  %1221 = vmatprep.mubr.bf16.mxu0 0
  %1222 = vmatmul.mubr.bf16.gmra.mrb[0].mxu0 %v1130
  %v1223 = vpop.f32.mrb[0].mxu0
  %v1224 = vadd.f32 0.0, %v1223
  %v1225 = vpop.f32.mrb[0].mxu0
  %v1226 = vpop.f32.mrb[0].mxu0
  %v1227 = vadd.f32 0.0, %v1226
  %v1228 = vpop.f32.mrb[0].mxu0
  %1229 = vmatprep.mubr.bf16.mxu0 0
  %1230 = vmatmul.mubr.bf16.gmra.mrb[0].mxu0 %v1132
  %v1231 = vpop.f32.mrb[0].mxu0
  %v1232 = vadd.f32 0.0, %v1231
  %v1233 = vpop.f32.mrb[0].mxu0
  %v1234 = vpop.f32.mrb[0].mxu0
  %v1235 = vadd.f32 0.0, %v1234
  %v1236 = vpop.f32.mrb[0].mxu0
  %1237 = vmatprep.mubr.bf16.mxu0 0
  %1238 = vmatmul.mubr.bf16.gmra.mrb[0].mxu0 %v1134
  %v1239 = vpop.f32.mrb[0].mxu0
  %v1240 = vadd.f32 0.0, %v1239
  %v1241 = vpop.f32.mrb[0].mxu0
  %v1242 = vpop.f32.mrb[0].mxu0
  %v1243 = vadd.f32 0.0, %v1242
  %v1244 = vpop.f32.mrb[0].mxu0
  %1245 = vmatprep.mubr.bf16.mxu0 0
  %1246 = vmatmul.mubr.bf16.gmra.mrb[0].mxu0 %v1136
  %v1247 = vpop.f32.mrb[0].mxu0
  %v1248 = vadd.f32 0.0, %v1247
  %v1249 = vpop.f32.mrb[0].mxu0
  %v1250 = vpop.f32.mrb[0].mxu0
  %v1251 = vadd.f32 0.0, %v1250
  %v1252 = vpop.f32.mrb[0].mxu0
  %1253 = vdwg.mxu0
  %v1254 = vadd.f32 %v1077, %v1224
  %v1255 = vadd.f32 %v1080, %v1227
  %v1256 = vadd.f32 %v1085, %v1232
  %v1257 = vadd.f32 %v1088, %v1235
  %v1258 = vadd.f32 %v1093, %v1240
  %v1259 = vadd.f32 %v1096, %v1243
  %v1260 = vadd.f32 %v1101, %v1248
  %v1261 = vadd.f32 %v1104, %v1251
  %v1262 = vld [vmem:[%s5] sm:$0x1]
  %v1264 = vlaneseq
  %v1265 = vshrl.u32 %v1264, 7
  %v1266 = vsub.s32 0, %v1265
  %v1267 = vrot.slane %v1262, %v1266
  %v1269 = vadd.f32 %v1254, %v1267
  %v1270 = vadd.f32 %v1255, %v1267
  %v1271 = vadd.f32 %v1256, %v1267
  %v1272 = vadd.f32 %v1257, %v1267
  %v1273 = vadd.f32 %v1258, %v1267
  %v1274 = vadd.f32 %v1259, %v1267
  %v1275 = vadd.f32 %v1260, %v1267
  %v1276 = vadd.f32 %v1261, %v1267
  %v1277 = vmax.f32 %v1269, 0.0
  %v1278 = vmax.f32 %v1270, 0.0
  %v1279 = vmax.f32 %v1271, 0.0
  %v1280 = vmax.f32 %v1272, 0.0
  %v1281 = vmax.f32 %v1273, 0.0
  %v1282 = vmax.f32 %v1274, 0.0
  %v1283 = vmax.f32 %v1275, 0.0
  %v1284 = vmax.f32 %v1276, 0.0
  %1285 = vst [vmem:[%s6] sm:$0xff] %v1277
  %1286 = vst [vmem:[%s6 + $0x8] sm:$0xff] %v1278
  %1287 = vst [vmem:[%s6 + $0x10] sm:$0xff] %v1279
  %1288 = vst [vmem:[%s6 + $0x18] sm:$0xff] %v1280
  %1289 = vst [vmem:[%s6 + $0x20] sm:$0xff] %v1281
  %1290 = vst [vmem:[%s6 + $0x28] sm:$0xff] %v1282
  %1291 = vst [vmem:[%s6 + $0x30] sm:$0xff] %v1283
  %1292 = vst [vmem:[%s6 + $0x38] sm:$0xff] %v1284
  // Predicated region
  $region26: #{conv_block_forward.1} parent=0 // pred_check
    _
  $region27: #{conv_block_forward.1} parent=0 // pred_check_branch
    %1294 = sbr.rel (0) target = $region29
  $region28: #{conv_block_forward.1} parent=0 // pred_region
    _
  $region29: #{conv_block_forward.1} parent=0 // pred_fallthru
    _
  // Predicated region
  $region30: #{conv_block_forward.1} parent=0 // pred_check
    _
  $region31: #{conv_block_forward.1} parent=0 // pred_check_branch
    %1296 = sbr.rel (0) target = $region33
  $region32: #{conv_block_forward.1} parent=0 // pred_region
    _
  $region33: #{conv_block_forward.1} parent=0 // pred_fallthru
    _

</llo_original>
